<compile_context>
chip_gen: v5e
topology: v5e:2x2
jax: 0.10.0
libtpu: 0.0.40
codegen_flags: <defaults>
</compile_context>

<pallas_src>
import functools

import jax
import jax.numpy as jnp
from jax import lax
from jax.experimental import pallas as pl
from jax.experimental.pallas import tpu as pltpu


LANE = 128


def _round_up(x, m):
    return ((x + m - 1) // m) * m


# ----------------------------------------------------------------------------
# Kernel 1: fused (conv bias + ReLU) -> global average pool.
#           grid = (batch tiles, spatial tiles); spatial axis is the reduction
#           axis; the output block doubles as the accumulator.
#           Spatial summation is done on the MXU (ones-matmul) so the VPU only
#           runs the packed-bf16 bias + ReLU.
# ----------------------------------------------------------------------------
def _gap_kernel(feat_ref, cb_ref, out_ref, *, inv_hw):
    t = pl.program_id(1)

    @pl.when(t == 0)
    def _():
        out_ref[...] = jnp.zeros_like(out_ref)

    x = feat_ref[...]                                    # [TB, thw, F] bf16
    x = jnp.maximum(x + cb_ref[...], 0.0)                # bias + ReLU (bf16 VPU)
    tb, thw, f = x.shape
    ones = jnp.ones((tb, 1, thw), jnp.bfloat16)
    psum = jnp.einsum("bos,bsf->bof", ones, x,           # spatial sum on MXU
                      preferred_element_type=jnp.float32)
    out_ref[...] += psum.reshape(tb, f)

    @pl.when(t == pl.num_programs(1) - 1)
    def _():
        out_ref[...] = out_ref[...] * inv_hw


def pallas_gap(feat, conv_b, hw_actual):
    """feat: [B, HW, F] bf16 conv output. Returns pooled means [B, F] f32."""
    B, HW, F = feat.shape
    TB = 8
    B_pad = _round_up(B, TB)
    thw = min(1024, _round_up(HW, 8))
    HW_pad = _round_up(HW, thw)
    if B_pad != B or HW_pad != HW:
        # -1e9 pad value => relu(pad + bias) == 0, so padded rows add nothing.
        feat = jnp.pad(feat, ((0, B_pad - B), (0, HW_pad - HW), (0, 0)),
                       constant_values=-1e9)

    kernel = functools.partial(_gap_kernel, inv_hw=1.0 / float(hw_actual))
    out = pl.pallas_call(
        kernel,
        out_shape=jax.ShapeDtypeStruct((B_pad, F), jnp.float32),
        grid=(B_pad // TB, HW_pad // thw),
        in_specs=[
            pl.BlockSpec((TB, thw, F), lambda b, t: (b, t, 0)),
            pl.BlockSpec((1, F), lambda b, t: (0, 0)),
        ],
        out_specs=pl.BlockSpec((TB, F), lambda b, t: (b, 0)),
        compiler_params=pltpu.CompilerParams(
            dimension_semantics=("parallel", "arbitrary")),
    )(feat, conv_b)
    return out[:B]


# ----------------------------------------------------------------------------
# Kernel 2: 2-layer MLP embedding network, applied once to ALL pooled rows
#           (support + query together in few-shot mode) -> full-width MXU use.
# ----------------------------------------------------------------------------
def _mlp_kernel(x_ref, w1_ref, b1_ref, w2_ref, b2_ref, out_ref):
    x = x_ref[...].astype(jnp.bfloat16)                  # [TN, F]
    h = jnp.dot(x, w1_ref[...],
                preferred_element_type=jnp.float32) + b1_ref[...]
    h = jnp.maximum(h, 0.0)
    e = jnp.dot(h.astype(jnp.bfloat16), w2_ref[...],
                preferred_element_type=jnp.float32) + b2_ref[...]
    out_ref[...] = e


def pallas_mlp(x, w1, b1, w2, b2):
    """x: [N, F] f32 pooled features. Returns embeddings [N, D] f32."""
    N, F = x.shape
    Hd = w1.shape[1]
    D = w2.shape[1]
    TN = _round_up(min(N, 256), 8)
    N_pad = _round_up(N, TN)
    if N_pad != N:
        x = jnp.pad(x, ((0, N_pad - N), (0, 0)))
    out = pl.pallas_call(
        _mlp_kernel,
        out_shape=jax.ShapeDtypeStruct((N_pad, D), jnp.float32),
        grid=(N_pad // TN,),
        in_specs=[
            pl.BlockSpec((TN, F), lambda i: (i, 0)),
            pl.BlockSpec((F, Hd), lambda i: (0, 0)),
            pl.BlockSpec((1, Hd), lambda i: (0, 0)),
            pl.BlockSpec((Hd, D), lambda i: (0, 0)),
            pl.BlockSpec((1, D), lambda i: (0, 0)),
        ],
        out_specs=pl.BlockSpec((TN, D), lambda i: (i, 0)),
        compiler_params=pltpu.CompilerParams(
            dimension_semantics=("parallel",)),
    )(x, w1, b1, w2, b2)
    return out[:N]


# ----------------------------------------------------------------------------
# Kernel 3: fused prototype init + refinement + negative-distance logits.
#           All distances via the matmul expansion (MXU), no [N, C, D]
#           broadcasts, no explicit transposes (dot_general picks the
#           contraction dims), final query dot in f32 HIGHEST precision.
# ----------------------------------------------------------------------------
def _proto_head_kernel(sup_ref, onehot_ref, qry_ref, logits_ref, proto_ref,
                       *, num_steps, inv_temp):
    emb = sup_ref[...]                                   # [Sp, D]  f32
    onehot = onehot_ref[...]                             # [Sp, Cp] f32
    q = qry_ref[...]                                     # [Qp, D]  f32

    emb_bf = emb.astype(jnp.bfloat16)

    # class-mean prototype init: normalize by scaling onehot columns (lane-
    # aligned [1, Cp] broadcast), then contract over the support axis.
    counts = jnp.sum(onehot, axis=0, keepdims=True)      # [1, Cp]
    onehot_n = (onehot * (1.0 / jnp.maximum(counts, 1.0))).astype(jnp.bfloat16)
    protos = lax.dot_general(onehot_n, emb_bf,
                             dimension_numbers=(((0,), (0,)), ((), ())),
                             preferred_element_type=jnp.float32)   # [Cp, D]

    # ||emb||^2 is loop-invariant; the per-prototype norm cancels inside each
    # per-class softmax column and is dropped.
    en = jnp.sum(emb * emb, axis=1, keepdims=True)       # [Sp, 1]
    mask = onehot > 0.0
    neg_big = jnp.float32(-1e30)

    for _ in range(num_steps):
        g = lax.dot_general(emb_bf, protos.astype(jnp.bfloat16),
                            dimension_numbers=(((1,), (1,)), ((), ())),
                            preferred_element_type=jnp.float32)    # [Sp, Cp]
        scores = 2.0 * g - en                            # == -||e - p||^2 + const
        masked = jnp.where(mask, scores, neg_big)
        m = jnp.max(masked, axis=0, keepdims=True)       # [1, Cp]
        ex = jnp.exp(masked - m)
        s = jnp.sum(ex, axis=0, keepdims=True)
        w = ex * pl.reciprocal(s, approx=True)           # softmax over support
        protos = lax.dot_general(w.astype(jnp.bfloat16), emb_bf,
                                 dimension_numbers=(((0,), (0,)), ((), ())),
                                 preferred_element_type=jnp.float32)

    # logits = -||q - p||^2 / temperature via matmul expansion; q.p in f32 to
    # avoid bf16 cancellation error in qn + pn - 2*gq.
    qn = jnp.sum(q * q, axis=1, keepdims=True)           # [Qp, 1]
    pn = jnp.sum(protos * protos, axis=1)[None, :]       # [1, Cp]
    gq = lax.dot_general(q, protos,
                         dimension_numbers=(((1,), (1,)), ((), ())),
                         precision=lax.Precision.HIGHEST,
                         preferred_element_type=jnp.float32)       # [Qp, Cp]
    d = qn + pn - 2.0 * gq
    logits_ref[...] = -(d * inv_temp)
    proto_ref[...] = protos


def pallas_proto_head(support_emb, onehot, query_emb, num_steps, temperature):
    S, D = support_emb.shape
    Q = query_emb.shape[0]
    Cp = onehot.shape[1]
    Sp = _round_up(S, 8)
    Qp = _round_up(Q, 8)
    if Sp != S:
        support_emb = jnp.pad(support_emb, ((0, Sp - S), (0, 0)))
        onehot = jnp.pad(onehot, ((0, Sp - S), (0, 0)))   # padded rows masked
    if Qp != Q:
        query_emb = jnp.pad(query_emb, ((0, Qp - Q), (0, 0)))

    kernel = functools.partial(_proto_head_kernel, num_steps=num_steps,
                               inv_temp=1.0 / float(temperature))
    logits, protos = pl.pallas_call(
        kernel,
        out_shape=(jax.ShapeDtypeStruct((Qp, Cp), jnp.float32),
                   jax.ShapeDtypeStruct((Cp, D), jnp.float32)),
        grid=(1,),
        in_specs=[
            pl.BlockSpec((Sp, D), lambda i: (0, 0)),
            pl.BlockSpec((Sp, Cp), lambda i: (0, 0)),
            pl.BlockSpec((Qp, D), lambda i: (0, 0)),
        ],
        out_specs=(pl.BlockSpec((Qp, Cp), lambda i: (0, 0)),
                   pl.BlockSpec((Cp, D), lambda i: (0, 0))),
    )(support_emb, onehot, query_emb)
    return logits[:Q], protos


# ----------------------------------------------------------------------------
# SPROUT model (JAX / Pallas)
# ----------------------------------------------------------------------------
class SproutPallas:
    def __init__(self, num_classes, *, in_channels=3, feature_dim=128,
                 embed_dim=128, hidden_dims=(128,), num_refinement_steps=3,
                 temperature=10.0, key=None):
        self.num_classes = num_classes
        self.padded_classes = _round_up(max(num_classes, 1), LANE)
        self.temperature = temperature
        self.num_refinement_steps = num_refinement_steps
        self.feature_dim = feature_dim
        self.embed_dim = embed_dim

        key = jax.random.PRNGKey(0) if key is None else key
        k_conv, k_h, k_o = jax.random.split(key, 3)

        # conv stem weights (HWIO) for lax.conv (bf16 so the conv writes bf16
        # features straight to HBM); bias fused into the GAP kernel.
        self.conv_w = (0.1 * jax.random.normal(
            k_conv, (3, 3, in_channels, feature_dim),
            jnp.float32)).astype(jnp.bfloat16)
        self.conv_b = jnp.zeros((1, feature_dim), jnp.bfloat16)

        # embedding network: feature_dim -> hidden -> embed_dim
        h = hidden_dims[0]
        self.w1 = (0.1 * jax.random.normal(
            k_h, (feature_dim, h), jnp.float32)).astype(jnp.bfloat16)
        self.b1 = jnp.zeros((1, h), jnp.float32)
        self.w2 = (0.1 * jax.random.normal(
            k_o, (h, embed_dim), jnp.float32)).astype(jnp.bfloat16)
        self.b2 = jnp.zeros((1, embed_dim), jnp.float32)

    def _extract_pooled(self, images_nchw):
        """images: [B, C, H, W] -> pooled features [B, feature_dim] f32."""
        x = jnp.transpose(images_nchw, (0, 2, 3, 1)).astype(jnp.bfloat16)  # NHWC
        feat = lax.conv_general_dilated(
            x, self.conv_w, window_strides=(1, 1), padding="SAME",
            dimension_numbers=("NHWC", "HWIO", "NHWC"))          # [B,H,W,F] bf16
        B, H, W, F = feat.shape
        feat = feat.reshape(B, H * W, F)                         # free reshape
        return pallas_gap(feat, self.conv_b, H * W)              # [B, F] f32

    def extract_features(self, images_nchw):
        """images -> embeddings [B, embed_dim]."""
        pooled = self._extract_pooled(images_nchw)
        return pallas_mlp(pooled, self.w1, self.b1, self.w2, self.b2)

    def __call__(self, query_images, support_images=None, support_labels=None):
        pooled_q = self._extract_pooled(query_images)
        if support_images is not None and support_labels is not None:
            pooled_s = self._extract_pooled(support_images)
            ns = pooled_s.shape[0]
            # One MXU pass over all support + query rows.
            emb = pallas_mlp(jnp.concatenate([pooled_s, pooled_q], axis=0),
                             self.w1, self.b1, self.w2, self.b2)
            support_embeddings = emb[:ns]
            query_embeddings = emb[ns:]
            onehot = jax.nn.one_hot(support_labels, self.padded_classes,
                                    dtype=jnp.float32)
            logits_p, protos_p = pallas_proto_head(
                support_embeddings, onehot, query_embeddings,
                self.num_refinement_steps, self.temperature)
            logits = logits_p[:, :self.num_classes]
            prototypes = protos_p[:self.num_classes, :]
            return logits, prototypes
        return pallas_mlp(pooled_q, self.w1, self.b1, self.w2, self.b2)


# ----------------------------------------------------------------------------
if __name__ == "__main__":
    key = jax.random.PRNGKey(0)
    k_q, k_s, k_p = jax.random.split(key, 3)

    num_classes = 5
    shots = 2
    B, Cin, H, W = 2, 3, 16, 16

    query_images = jax.random.normal(k_q, (B, Cin, H, W), jnp.float32)
    support_images = jax.random.normal(
        k_s, (num_classes * shots, Cin, H, W), jnp.float32)
    support_labels = jnp.repeat(jnp.arange(num_classes, dtype=jnp.int32), shots)

    model = SproutPallas(num_classes, key=k_p)

    # Few-shot mode
    logits, prototypes = model(query_images, support_images, support_labels)
    logits = jax.block_until_ready(logits)
    prototypes = jax.block_until_ready(prototypes)
    assert logits.shape == (B, num_classes)
    assert prototypes.shape == (num_classes, model.embed_dim)

    # Feature-extraction mode
    q_emb = jax.block_until_ready(model(query_images))
    assert q_emb.shape == (B, model.embed_dim)

    assert jnp.all(jnp.isfinite(logits)) and jnp.all(jnp.isfinite(prototypes))
    assert jnp.all(jnp.isfinite(q_emb))
    print("KERNEL_OK")
</pallas_src>

<mosaic_0001>
module attributes {stable_mosaic.version = 11 : i64} {
  func.func @_gap_kernel(%arg0: i32, %arg1: i32, %arg2: memref<8x256x128xbf16, #tpu.memory_space<vmem>>, %arg3: memref<1x128xbf16, #tpu.memory_space<vmem>>, %arg4: memref<8x128xf32, #tpu.memory_space<vmem>>) attributes {dimension_semantics = [#tpu.dimension_semantics<parallel>, #tpu.dimension_semantics<arbitrary>], iteration_bounds = array<i64: 1, 1>, scalar_prefetch = 0 : i64, scratch_operands = 0 : i64, tpu.core_type = #tpu.core_type<tc>, window_params = [{transform_indices = @transform_0, window_bounds = array<i64: 8, 256, 128>}, {pipeline_mode = #tpu.pipeline_mode<synchronous>, transform_indices = @transform_1, window_bounds = array<i64: 1, 128>}, {transform_indices = @transform_2, window_bounds = array<i64: 8, 128>}]} {
    %c0_i32 = arith.constant 0 : i32
    %0 = arith.cmpi eq, %arg1, %c0_i32 : i32
    %1 = arith.extui %0 : i1 to i32
    %c0_i32_0 = arith.constant 0 : i32
    %2 = arith.cmpi ne, %1, %c0_i32_0 : i32
    scf.if %2 {
      %cst_13 = arith.constant 0.000000e+00 : f32
      %19 = vector.broadcast %cst_13 : f32 to vector<8x128xf32>
      %c0_14 = arith.constant 0 : index
      %c0_15 = arith.constant 0 : index
      %20 = vector.load %arg4[%c0_14, %c0_15] : memref<8x128xf32, #tpu.memory_space<vmem>>, vector<8x128xf32>
      tpu.vector_store %arg4[%c0_14, %c0_15], %19 {strides = array<i32>} : memref<8x128xf32, #tpu.memory_space<vmem>>, vector<8x128xf32>,
    } else {
    }
    %c0 = arith.constant 0 : index
    %c0_1 = arith.constant 0 : index
    %c0_2 = arith.constant 0 : index
    %3 = vector.load %arg2[%c0, %c0_1, %c0_2] : memref<8x256x128xbf16, #tpu.memory_space<vmem>>, vector<8x256x128xbf16>
    %c0_3 = arith.constant 0 : index
    %c0_4 = arith.constant 0 : index
    %4 = vector.load %arg3[%c0_3, %c0_4] : memref<1x128xbf16, #tpu.memory_space<vmem>>, vector<1x128xbf16>
    %5 = vector.shape_cast %4 : vector<1x128xbf16> to vector<1x1x128xbf16>
    %6 = vector.broadcast %5 : vector<1x1x128xbf16> to vector<8x256x128xbf16>
    %7 = arith.addf %3, %6 : vector<8x256x128xbf16>
    %cst = arith.constant 0.000000e+00 : bf16
    %8 = vector.broadcast %cst : bf16 to vector<8x256x128xbf16>
    %9 = arith.maximumf %7, %8 : vector<8x256x128xbf16>
    %cst_5 = arith.constant 1.000000e+00 : bf16
    %10 = vector.broadcast %cst_5 : bf16 to vector<8x1x256xbf16>
    "tpu.trace_start"() <{level = 10 : i32, message = "bos,bsf->bof"}> : () -> ()
    %cst_6 = arith.constant dense<0.000000e+00> : vector<8x1x128xf32>
    %11 = tpu.matmul %10, %9, %cst_6 {dimension_numbers = #tpu.dot_dimension_numbers<[2], [1], [1], [2], [0, 0, 0, 1, 1, 2], [0], [0]>} : vector<8x1x256xbf16>, vector<8x256x128xbf16>, vector<8x1x128xf32> -> vector<8x1x128xf32>
    "tpu.trace_stop"() : () -> ()
    %c0_7 = arith.constant 0 : index
    %c0_8 = arith.constant 0 : index
    %12 = vector.load %arg4[%c0_7, %c0_8] : memref<8x128xf32, #tpu.memory_space<vmem>>, vector<8x128xf32>
    %13 = vector.shape_cast %11 : vector<8x1x128xf32> to vector<8x128xf32>
    %14 = arith.addf %12, %13 : vector<8x128xf32>
    %c0_9 = arith.constant 0 : index
    %c0_10 = arith.constant 0 : index
    %15 = vector.load %arg4[%c0_9, %c0_10] : memref<8x128xf32, #tpu.memory_space<vmem>>, vector<8x128xf32>
    tpu.vector_store %arg4[%c0_9, %c0_10], %14 {strides = array<i32>} : memref<8x128xf32, #tpu.memory_space<vmem>>, vector<8x128xf32>,
    %c0_i32_11 = arith.constant 0 : i32
    %16 = arith.cmpi eq, %arg1, %c0_i32_11 : i32
    %17 = arith.extui %16 : i1 to i32
    %c0_i32_12 = arith.constant 0 : i32
    %18 = arith.cmpi ne, %17, %c0_i32_12 : i32
    scf.if %18 {
      %c0_13 = arith.constant 0 : index
      %c0_14 = arith.constant 0 : index
      %19 = vector.load %arg4[%c0_13, %c0_14] : memref<8x128xf32, #tpu.memory_space<vmem>>, vector<8x128xf32>
      %cst_15 = arith.constant 3.906250e-03 : f32
      %20 = vector.broadcast %cst_15 : f32 to vector<8x128xf32>
      %21 = arith.mulf %19, %20 : vector<8x128xf32>
      %c0_16 = arith.constant 0 : index
      %c0_17 = arith.constant 0 : index
      %22 = vector.load %arg4[%c0_16, %c0_17] : memref<8x128xf32, #tpu.memory_space<vmem>>, vector<8x128xf32>
      tpu.vector_store %arg4[%c0_16, %c0_17], %21 {strides = array<i32>} : memref<8x128xf32, #tpu.memory_space<vmem>>, vector<8x128xf32>,
    } else {
    }
    return
  }
  func.func @transform_0(%arg0: i32, %arg1: i32) -> (i32, i32, i32) {
    %c0_i32 = arith.constant 0 : i32
    %c0_i32_0 = arith.constant 0 : i32
    return %arg0, %arg1, %c0_i32 : i32, i32, i32
  }
  func.func @transform_1(%arg0: i32, %arg1: i32) -> (i32, i32) {
    %c0_i32 = arith.constant 0 : i32
    %c0_i32_0 = arith.constant 0 : i32
    %c0_i32_1 = arith.constant 0 : i32
    return %c0_i32, %c0_i32_0 : i32, i32
  }
  func.func @transform_2(%arg0: i32, %arg1: i32) -> (i32, i32) {
    %c0_i32 = arith.constant 0 : i32
    %c0_i32_0 = arith.constant 0 : i32
    return %arg0, %c0_i32 : i32, i32
  }
}

</mosaic_0001>

<llo_original>
// kernel: tpu_custom_call.1
$region0: #{tpu_custom_call.1}
  #allocation0 [shape = 'u32[]', space=smem, size = 0x4, offset = 0x4, fixed_abs, tag = 'smem constant byte address 0x4 - core index']
  #allocation1 [shape = 'u32[72,128]{1,0:T(1,128)}', space=vmem, size = 0x9000, scoped, tag = 'internal scratch']
  %s0 = inlined_call_operand.hbm [shape: bf16[8,256,128], index: 0, kind: input, shape index: {}]
  %s1 = inlined_call_operand.hbm [shape: bf16[1,128], index: 1, kind: input, shape index: {}]
  %s2 = inlined_call_operand.hbm [shape: f32[8,128], index: 2, kind: output, shape index: {}]
  %s3 = sld [smem:[#allocation0]]
  $region34: #{tpu_custom_call.1} parent=0
    _
  %s5 = ssub.s32 1, %s3
  %s6 = scalar_select 0, %s5, %s3
  $region1: #{tpu_custom_call.1} parent=0
    #allocation2 [shape = 'u8[524288]{0}', space=vmem, size = 0x80000, scoped, tag = 'input window, operand 0, single buffered']
    #allocation3 [shape = 's32[1]{0}', space=sflag, size = 0x4, scoped, tag = 'scoped memory for tpu_custom_call.1']
    #allocation4 [shape = 's32[1]{0}', space=sflag, size = 0x4, scoped, tag = 'scoped memory for tpu_custom_call.1']
    #allocation5 [shape = 'u8[512]{0}', space=vmem, size = 0x400, scoped, tag = 'input window, operand 1, single buffered']
    #allocation6 [shape = 's32[1]{0}', space=sflag, size = 0x4, scoped, tag = 'scoped memory for tpu_custom_call.1']
    #allocation7 [shape = 'u8[4096]{0}', space=vmem, size = 0x1000, scoped, tag = 'output window, operand 0, single buffered']
    %7 = vsyncpa [#allocation3], 0
    %8 = vsyncpa [#allocation6], 0
    %9 = vsyncpa [#allocation4], 0
    // Predicated region
    $region2: #{tpu_custom_call.1} parent=1 // pred_check
      _
    $region3: #{tpu_custom_call.1} parent=1 // pred_check_branch
      %11 = sbr.rel (0) target = $region5
    $region4: #{tpu_custom_call.1} parent=1 // pred_region
      %13 = vsyncadd [#allocation3], 0
      %s14 = sshll.u32 %s0, 4
      %s15 = int_to_ptr.hbm [resolvable:$true] %s14
      %s16 = sshll.u32 [#allocation2], 4
      %s17 = int_to_ptr.vmem [resolvable:$true] %s16
      %22 = dma.hbm_to_vmem [thread:$0]  %s15, 16384, %s17, [#allocation3], 64, 64, 4
    $region5: #{tpu_custom_call.1} parent=1 // pred_fallthru
      _
    // Predicated region
    $region6: #{tpu_custom_call.1} parent=1 // pred_check
      _
    $region7: #{tpu_custom_call.1} parent=1 // pred_check_branch
      %24 = sbr.rel (0) target = $region9
    $region8: #{tpu_custom_call.1} parent=1 // pred_region
      %26 = vsyncadd [#allocation6], 0
      %s28 = sshll.u32 %s1, 4
      %s29 = int_to_ptr.hbm [resolvable:$true] %s28
      %s30 = sshll.u32 [#allocation5], 4
      %s31 = int_to_ptr.vmem [resolvable:$true] %s30
      %33 = dma.hbm_to_vmem [thread:$0]  %s29, 16, %s31, [#allocation6]
    $region9: #{tpu_custom_call.1} parent=1 // pred_fallthru
      _
    // Predicated region
    $region10: #{tpu_custom_call.1} parent=1 // pred_check
      _
    $region11: #{tpu_custom_call.1} parent=1 // pred_check_branch
      %35 = sbr.rel (0) target = $region13
    $region12: #{tpu_custom_call.1} parent=1 // pred_region
      %37 = dma.done [#allocation3], 16384
    $region13: #{tpu_custom_call.1} parent=1 // pred_fallthru
      _
    // Predicated region
    $region14: #{tpu_custom_call.1} parent=1 // pred_check
      _
    $region15: #{tpu_custom_call.1} parent=1 // pred_check_branch
      %39 = sbr.rel (0) target = $region17
    $region16: #{tpu_custom_call.1} parent=1 // pred_region
      %41 = dma.done [#allocation6], 16
    $region17: #{tpu_custom_call.1} parent=1 // pred_fallthru
      _
    %p43 = scmp.eq.s32.totalorder 0, 0
    // Predicated region
    $region18: #{tpu_custom_call.1} parent=1 // pred_check
      %p44 = pneg %p43
    $region19: #{tpu_custom_call.1} parent=1 // pred_check_branch
      %46 = sbr.rel (%p44) target = $region21
    $region20: #{tpu_custom_call.1} parent=1 // pred_region
      %47 = vst [vmem:[#allocation7] sm:$0xff] 0.0
    $region21: #{tpu_custom_call.1} parent=1 // pred_fallthru
      _
    %v48 = vld [vmem:[#allocation2] sm:$0xf]
    %v49 = vld [vmem:[#allocation2 + $0x4] sm:$0xf]
    %v50 = vld [vmem:[#allocation2 + $0x8] sm:$0xf]
    %v51 = vld [vmem:[#allocation2 + $0xc] sm:$0xf]
    %v52 = vld [vmem:[#allocation2 + $0x10] sm:$0xf]
    %v53 = vld [vmem:[#allocation2 + $0x14] sm:$0xf]
    %v54 = vld [vmem:[#allocation2 + $0x18] sm:$0xf]
    %v55 = vld [vmem:[#allocation2 + $0x1c] sm:$0xf]
    %v56 = vld [vmem:[#allocation2 + $0x20] sm:$0xf]
    %v57 = vld [vmem:[#allocation2 + $0x24] sm:$0xf]
    %v58 = vld [vmem:[#allocation2 + $0x28] sm:$0xf]
    %v59 = vld [vmem:[#allocation2 + $0x2c] sm:$0xf]
    %v60 = vld [vmem:[#allocation2 + $0x30] sm:$0xf]
    %v61 = vld [vmem:[#allocation2 + $0x34] sm:$0xf]
    %v62 = vld [vmem:[#allocation2 + $0x38] sm:$0xf]
    %v63 = vld [vmem:[#allocation2 + $0x3c] sm:$0xf]
    %v64 = vld [vmem:[#allocation2 + $0x40] sm:$0xf]
    %v65 = vld [vmem:[#allocation2 + $0x44] sm:$0xf]
    %v66 = vld [vmem:[#allocation2 + $0x48] sm:$0xf]
    %v67 = vld [vmem:[#allocation2 + $0x4c] sm:$0xf]
    %v68 = vld [vmem:[#allocation2 + $0x50] sm:$0xf]
    %v69 = vld [vmem:[#allocation2 + $0x54] sm:$0xf]
    %v70 = vld [vmem:[#allocation2 + $0x58] sm:$0xf]
    %v71 = vld [vmem:[#allocation2 + $0x5c] sm:$0xf]
    %v72 = vld [vmem:[#allocation2 + $0x60] sm:$0xf]
    %v73 = vld [vmem:[#allocation2 + $0x64] sm:$0xf]
    %v74 = vld [vmem:[#allocation2 + $0x68] sm:$0xf]
    %v75 = vld [vmem:[#allocation2 + $0x6c] sm:$0xf]
    %v76 = vld [vmem:[#allocation2 + $0x70] sm:$0xf]
    %v77 = vld [vmem:[#allocation2 + $0x74] sm:$0xf]
    %v78 = vld [vmem:[#allocation2 + $0x78] sm:$0xf]
    %v79 = vld [vmem:[#allocation2 + $0x7c] sm:$0xf]
    %v80 = vld [vmem:[#allocation2 + $0x80] sm:$0xf]
    %v81 = vld [vmem:[#allocation2 + $0x84] sm:$0xf]
    %v82 = vld [vmem:[#allocation2 + $0x88] sm:$0xf]
    %v83 = vld [vmem:[#allocation2 + $0x8c] sm:$0xf]
    %v84 = vld [vmem:[#allocation2 + $0x90] sm:$0xf]
    %v85 = vld [vmem:[#allocation2 + $0x94] sm:$0xf]
    %v86 = vld [vmem:[#allocation2 + $0x98] sm:$0xf]
    %v87 = vld [vmem:[#allocation2 + $0x9c] sm:$0xf]
    %v88 = vld [vmem:[#allocation2 + $0xa0] sm:$0xf]
    %v89 = vld [vmem:[#allocation2 + $0xa4] sm:$0xf]
    %v90 = vld [vmem:[#allocation2 + $0xa8] sm:$0xf]
    %v91 = vld [vmem:[#allocation2 + $0xac] sm:$0xf]
    %v92 = vld [vmem:[#allocation2 + $0xb0] sm:$0xf]
    %v93 = vld [vmem:[#allocation2 + $0xb4] sm:$0xf]
    %v94 = vld [vmem:[#allocation2 + $0xb8] sm:$0xf]
    %v95 = vld [vmem:[#allocation2 + $0xbc] sm:$0xf]
    %v96 = vld [vmem:[#allocation2 + $0xc0] sm:$0xf]
    %v97 = vld [vmem:[#allocation2 + $0xc4] sm:$0xf]
    %v98 = vld [vmem:[#allocation2 + $0xc8] sm:$0xf]
    %v99 = vld [vmem:[#allocation2 + $0xcc] sm:$0xf]
    %v100 = vld [vmem:[#allocation2 + $0xd0] sm:$0xf]
    %v101 = vld [vmem:[#allocation2 + $0xd4] sm:$0xf]
    %v102 = vld [vmem:[#allocation2 + $0xd8] sm:$0xf]
    %v103 = vld [vmem:[#allocation2 + $0xdc] sm:$0xf]
    %v104 = vld [vmem:[#allocation2 + $0xe0] sm:$0xf]
    %v105 = vld [vmem:[#allocation2 + $0xe4] sm:$0xf]
    %v106 = vld [vmem:[#allocation2 + $0xe8] sm:$0xf]
    %v107 = vld [vmem:[#allocation2 + $0xec] sm:$0xf]
    %v108 = vld [vmem:[#allocation2 + $0xf0] sm:$0xf]
    %v109 = vld [vmem:[#allocation2 + $0xf4] sm:$0xf]
    %v110 = vld [vmem:[#allocation2 + $0xf8] sm:$0xf]
    %v111 = vld [vmem:[#allocation2 + $0xfc] sm:$0xf]
    %v112 = vld [vmem:[#allocation2 + $0x100] sm:$0xf]
    %v113 = vld [vmem:[#allocation2 + $0x104] sm:$0xf]
    %v114 = vld [vmem:[#allocation2 + $0x108] sm:$0xf]
    %v115 = vld [vmem:[#allocation2 + $0x10c] sm:$0xf]
    %v116 = vld [vmem:[#allocation2 + $0x110] sm:$0xf]
    %v117 = vld [vmem:[#allocation2 + $0x114] sm:$0xf]
    %v118 = vld [vmem:[#allocation2 + $0x118] sm:$0xf]
    %v119 = vld [vmem:[#allocation2 + $0x11c] sm:$0xf]
    %v120 = vld [vmem:[#allocation2 + $0x120] sm:$0xf]
    %v121 = vld [vmem:[#allocation2 + $0x124] sm:$0xf]
    %v122 = vld [vmem:[#allocation2 + $0x128] sm:$0xf]
    %v123 = vld [vmem:[#allocation2 + $0x12c] sm:$0xf]
    %v124 = vld [vmem:[#allocation2 + $0x130] sm:$0xf]
    %v125 = vld [vmem:[#allocation2 + $0x134] sm:$0xf]
    %v126 = vld [vmem:[#allocation2 + $0x138] sm:$0xf]
    %v127 = vld [vmem:[#allocation2 + $0x13c] sm:$0xf]
    %v128 = vld [vmem:[#allocation2 + $0x140] sm:$0xf]
    %v129 = vld [vmem:[#allocation2 + $0x144] sm:$0xf]
    %v130 = vld [vmem:[#allocation2 + $0x148] sm:$0xf]
    %v131 = vld [vmem:[#allocation2 + $0x14c] sm:$0xf]
    %v132 = vld [vmem:[#allocation2 + $0x150] sm:$0xf]
    %v133 = vld [vmem:[#allocation2 + $0x154] sm:$0xf]
    %v134 = vld [vmem:[#allocation2 + $0x158] sm:$0xf]
    %v135 = vld [vmem:[#allocation2 + $0x15c] sm:$0xf]
    %v136 = vld [vmem:[#allocation2 + $0x160] sm:$0xf]
    %v137 = vld [vmem:[#allocation2 + $0x164] sm:$0xf]
    %v138 = vld [vmem:[#allocation2 + $0x168] sm:$0xf]
    %v139 = vld [vmem:[#allocation2 + $0x16c] sm:$0xf]
    %v140 = vld [vmem:[#allocation2 + $0x170] sm:$0xf]
    %v141 = vld [vmem:[#allocation2 + $0x174] sm:$0xf]
    %v142 = vld [vmem:[#allocation2 + $0x178] sm:$0xf]
    %v143 = vld [vmem:[#allocation2 + $0x17c] sm:$0xf]
    %v144 = vld [vmem:[#allocation2 + $0x180] sm:$0xf]
    %v145 = vld [vmem:[#allocation2 + $0x184] sm:$0xf]
    %v146 = vld [vmem:[#allocation2 + $0x188] sm:$0xf]
    %v147 = vld [vmem:[#allocation2 + $0x18c] sm:$0xf]
    %v148 = vld [vmem:[#allocation2 + $0x190] sm:$0xf]
    %v149 = vld [vmem:[#allocation2 + $0x194] sm:$0xf]
    %v150 = vld [vmem:[#allocation2 + $0x198] sm:$0xf]
    %v151 = vld [vmem:[#allocation2 + $0x19c] sm:$0xf]
    %v152 = vld [vmem:[#allocation2 + $0x1a0] sm:$0xf]
    %v153 = vld [vmem:[#allocation2 + $0x1a4] sm:$0xf]
    %v154 = vld [vmem:[#allocation2 + $0x1a8] sm:$0xf]
    %v155 = vld [vmem:[#allocation2 + $0x1ac] sm:$0xf]
    %v156 = vld [vmem:[#allocation2 + $0x1b0] sm:$0xf]
    %v157 = vld [vmem:[#allocation2 + $0x1b4] sm:$0xf]
    %v158 = vld [vmem:[#allocation2 + $0x1b8] sm:$0xf]
    %v159 = vld [vmem:[#allocation2 + $0x1bc] sm:$0xf]
    %v160 = vld [vmem:[#allocation2 + $0x1c0] sm:$0xf]
    %v161 = vld [vmem:[#allocation2 + $0x1c4] sm:$0xf]
    %v162 = vld [vmem:[#allocation2 + $0x1c8] sm:$0xf]
    %v163 = vld [vmem:[#allocation2 + $0x1cc] sm:$0xf]
    %v164 = vld [vmem:[#allocation2 + $0x1d0] sm:$0xf]
    %v165 = vld [vmem:[#allocation2 + $0x1d4] sm:$0xf]
    %v166 = vld [vmem:[#allocation2 + $0x1d8] sm:$0xf]
    %v167 = vld [vmem:[#allocation2 + $0x1dc] sm:$0xf]
    %v168 = vld [vmem:[#allocation2 + $0x1e0] sm:$0xf]
    %v169 = vld [vmem:[#allocation2 + $0x1e4] sm:$0xf]
    %v170 = vld [vmem:[#allocation2 + $0x1e8] sm:$0xf]
    %v171 = vld [vmem:[#allocation2 + $0x1ec] sm:$0xf]
    %v172 = vld [vmem:[#allocation2 + $0x1f0] sm:$0xf]
    %v173 = vld [vmem:[#allocation2 + $0x1f4] sm:$0xf]
    %v174 = vld [vmem:[#allocation2 + $0x1f8] sm:$0xf]
    %v175 = vld [vmem:[#allocation2 + $0x1fc] sm:$0xf]
    %v176 = vld [vmem:[#allocation2 + $0x200] sm:$0xf]
    %v177 = vld [vmem:[#allocation2 + $0x204] sm:$0xf]
    %v178 = vld [vmem:[#allocation2 + $0x208] sm:$0xf]
    %v179 = vld [vmem:[#allocation2 + $0x20c] sm:$0xf]
    %v180 = vld [vmem:[#allocation2 + $0x210] sm:$0xf]
    %v181 = vld [vmem:[#allocation2 + $0x214] sm:$0xf]
    %v182 = vld [vmem:[#allocation2 + $0x218] sm:$0xf]
    %v183 = vld [vmem:[#allocation2 + $0x21c] sm:$0xf]
    %v184 = vld [vmem:[#allocation2 + $0x220] sm:$0xf]
    %v185 = vld [vmem:[#allocation2 + $0x224] sm:$0xf]
    %v186 = vld [vmem:[#allocation2 + $0x228] sm:$0xf]
    %v187 = vld [vmem:[#allocation2 + $0x22c] sm:$0xf]
    %v188 = vld [vmem:[#allocation2 + $0x230] sm:$0xf]
    %v189 = vld [vmem:[#allocation2 + $0x234] sm:$0xf]
    %v190 = vld [vmem:[#allocation2 + $0x238] sm:$0xf]
    %v191 = vld [vmem:[#allocation2 + $0x23c] sm:$0xf]
    %v192 = vld [vmem:[#allocation2 + $0x240] sm:$0xf]
    %v193 = vld [vmem:[#allocation2 + $0x244] sm:$0xf]
    %v194 = vld [vmem:[#allocation2 + $0x248] sm:$0xf]
    %v195 = vld [vmem:[#allocation2 + $0x24c] sm:$0xf]
    %v196 = vld [vmem:[#allocation2 + $0x250] sm:$0xf]
    %v197 = vld [vmem:[#allocation2 + $0x254] sm:$0xf]
    %v198 = vld [vmem:[#allocation2 + $0x258] sm:$0xf]
    %v199 = vld [vmem:[#allocation2 + $0x25c] sm:$0xf]
    %v200 = vld [vmem:[#allocation2 + $0x260] sm:$0xf]
    %v201 = vld [vmem:[#allocation2 + $0x264] sm:$0xf]
    %v202 = vld [vmem:[#allocation2 + $0x268] sm:$0xf]
    %v203 = vld [vmem:[#allocation2 + $0x26c] sm:$0xf]
    %v204 = vld [vmem:[#allocation2 + $0x270] sm:$0xf]
    %v205 = vld [vmem:[#allocation2 + $0x274] sm:$0xf]
    %v206 = vld [vmem:[#allocation2 + $0x278] sm:$0xf]
    %v207 = vld [vmem:[#allocation2 + $0x27c] sm:$0xf]
    %v208 = vld [vmem:[#allocation2 + $0x280] sm:$0xf]
    %v209 = vld [vmem:[#allocation2 + $0x284] sm:$0xf]
    %v210 = vld [vmem:[#allocation2 + $0x288] sm:$0xf]
    %v211 = vld [vmem:[#allocation2 + $0x28c] sm:$0xf]
    %v212 = vld [vmem:[#allocation2 + $0x290] sm:$0xf]
    %v213 = vld [vmem:[#allocation2 + $0x294] sm:$0xf]
    %v214 = vld [vmem:[#allocation2 + $0x298] sm:$0xf]
    %v215 = vld [vmem:[#allocation2 + $0x29c] sm:$0xf]
    %v216 = vld [vmem:[#allocation2 + $0x2a0] sm:$0xf]
    %v217 = vld [vmem:[#allocation2 + $0x2a4] sm:$0xf]
    %v218 = vld [vmem:[#allocation2 + $0x2a8] sm:$0xf]
    %v219 = vld [vmem:[#allocation2 + $0x2ac] sm:$0xf]
    %v220 = vld [vmem:[#allocation2 + $0x2b0] sm:$0xf]
    %v221 = vld [vmem:[#allocation2 + $0x2b4] sm:$0xf]
    %v222 = vld [vmem:[#allocation2 + $0x2b8] sm:$0xf]
    %v223 = vld [vmem:[#allocation2 + $0x2bc] sm:$0xf]
    %v224 = vld [vmem:[#allocation2 + $0x2c0] sm:$0xf]
    %v225 = vld [vmem:[#allocation2 + $0x2c4] sm:$0xf]
    %v226 = vld [vmem:[#allocation2 + $0x2c8] sm:$0xf]
    %v227 = vld [vmem:[#allocation2 + $0x2cc] sm:$0xf]
    %v228 = vld [vmem:[#allocation2 + $0x2d0] sm:$0xf]
    %v229 = vld [vmem:[#allocation2 + $0x2d4] sm:$0xf]
    %v230 = vld [vmem:[#allocation2 + $0x2d8] sm:$0xf]
    %v231 = vld [vmem:[#allocation2 + $0x2dc] sm:$0xf]
    %v232 = vld [vmem:[#allocation2 + $0x2e0] sm:$0xf]
    %v233 = vld [vmem:[#allocation2 + $0x2e4] sm:$0xf]
    %v234 = vld [vmem:[#allocation2 + $0x2e8] sm:$0xf]
    %v235 = vld [vmem:[#allocation2 + $0x2ec] sm:$0xf]
    %v236 = vld [vmem:[#allocation2 + $0x2f0] sm:$0xf]
    %v237 = vld [vmem:[#allocation2 + $0x2f4] sm:$0xf]
    %v238 = vld [vmem:[#allocation2 + $0x2f8] sm:$0xf]
    %v239 = vld [vmem:[#allocation2 + $0x2fc] sm:$0xf]
    %v240 = vld [vmem:[#allocation2 + $0x300] sm:$0xf]
    %v241 = vld [vmem:[#allocation2 + $0x304] sm:$0xf]
    %v242 = vld [vmem:[#allocation2 + $0x308] sm:$0xf]
    %v243 = vld [vmem:[#allocation2 + $0x30c] sm:$0xf]
    %v244 = vld [vmem:[#allocation2 + $0x310] sm:$0xf]
    %v245 = vld [vmem:[#allocation2 + $0x314] sm:$0xf]
    %v246 = vld [vmem:[#allocation2 + $0x318] sm:$0xf]
    %v247 = vld [vmem:[#allocation2 + $0x31c] sm:$0xf]
    %v248 = vld [vmem:[#allocation2 + $0x320] sm:$0xf]
    %v249 = vld [vmem:[#allocation2 + $0x324] sm:$0xf]
    %v250 = vld [vmem:[#allocation2 + $0x328] sm:$0xf]
    %v251 = vld [vmem:[#allocation2 + $0x32c] sm:$0xf]
    %v252 = vld [vmem:[#allocation2 + $0x330] sm:$0xf]
    %v253 = vld [vmem:[#allocation2 + $0x334] sm:$0xf]
    %v254 = vld [vmem:[#allocation2 + $0x338] sm:$0xf]
    %v255 = vld [vmem:[#allocation2 + $0x33c] sm:$0xf]
    %v256 = vld [vmem:[#allocation2 + $0x340] sm:$0xf]
    %v257 = vld [vmem:[#allocation2 + $0x344] sm:$0xf]
    %v258 = vld [vmem:[#allocation2 + $0x348] sm:$0xf]
    %v259 = vld [vmem:[#allocation2 + $0x34c] sm:$0xf]
    %v260 = vld [vmem:[#allocation2 + $0x350] sm:$0xf]
    %v261 = vld [vmem:[#allocation2 + $0x354] sm:$0xf]
    %v262 = vld [vmem:[#allocation2 + $0x358] sm:$0xf]
    %v263 = vld [vmem:[#allocation2 + $0x35c] sm:$0xf]
    %v264 = vld [vmem:[#allocation2 + $0x360] sm:$0xf]
    %v265 = vld [vmem:[#allocation2 + $0x364] sm:$0xf]
    %v266 = vld [vmem:[#allocation2 + $0x368] sm:$0xf]
    %v267 = vld [vmem:[#allocation2 + $0x36c] sm:$0xf]
    %v268 = vld [vmem:[#allocation2 + $0x370] sm:$0xf]
    %v269 = vld [vmem:[#allocation2 + $0x374] sm:$0xf]
    %v270 = vld [vmem:[#allocation2 + $0x378] sm:$0xf]
    %v271 = vld [vmem:[#allocation2 + $0x37c] sm:$0xf]
    %v272 = vld [vmem:[#allocation2 + $0x380] sm:$0xf]
    %v273 = vld [vmem:[#allocation2 + $0x384] sm:$0xf]
    %v274 = vld [vmem:[#allocation2 + $0x388] sm:$0xf]
    %v275 = vld [vmem:[#allocation2 + $0x38c] sm:$0xf]
    %v276 = vld [vmem:[#allocation2 + $0x390] sm:$0xf]
    %v277 = vld [vmem:[#allocation2 + $0x394] sm:$0xf]
    %v278 = vld [vmem:[#allocation2 + $0x398] sm:$0xf]
    %v279 = vld [vmem:[#allocation2 + $0x39c] sm:$0xf]
    %v280 = vld [vmem:[#allocation2 + $0x3a0] sm:$0xf]
    %v281 = vld [vmem:[#allocation2 + $0x3a4] sm:$0xf]
    %v282 = vld [vmem:[#allocation2 + $0x3a8] sm:$0xf]
    %v283 = vld [vmem:[#allocation2 + $0x3ac] sm:$0xf]
    %v284 = vld [vmem:[#allocation2 + $0x3b0] sm:$0xf]
    %v285 = vld [vmem:[#allocation2 + $0x3b4] sm:$0xf]
    %v286 = vld [vmem:[#allocation2 + $0x3b8] sm:$0xf]
    %v287 = vld [vmem:[#allocation2 + $0x3bc] sm:$0xf]
    %v288 = vld [vmem:[#allocation2 + $0x3c0] sm:$0xf]
    %v289 = vld [vmem:[#allocation2 + $0x3c4] sm:$0xf]
    %v290 = vld [vmem:[#allocation2 + $0x3c8] sm:$0xf]
    %v291 = vld [vmem:[#allocation2 + $0x3cc] sm:$0xf]
    %v292 = vld [vmem:[#allocation2 + $0x3d0] sm:$0xf]
    %v293 = vld [vmem:[#allocation2 + $0x3d4] sm:$0xf]
    %v294 = vld [vmem:[#allocation2 + $0x3d8] sm:$0xf]
    %v295 = vld [vmem:[#allocation2 + $0x3dc] sm:$0xf]
    %v296 = vld [vmem:[#allocation2 + $0x3e0] sm:$0xf]
    %v297 = vld [vmem:[#allocation2 + $0x3e4] sm:$0xf]
    %v298 = vld [vmem:[#allocation2 + $0x3e8] sm:$0xf]
    %v299 = vld [vmem:[#allocation2 + $0x3ec] sm:$0xf]
    %v300 = vld [vmem:[#allocation2 + $0x3f0] sm:$0xf]
    %v301 = vld [vmem:[#allocation2 + $0x3f4] sm:$0xf]
    %v302 = vld [vmem:[#allocation2 + $0x3f8] sm:$0xf]
    %v303 = vld [vmem:[#allocation2 + $0x3fc] sm:$0xf]
    %v304 = vld [vmem:[#allocation5] sm:$0x1]
    %v306 = vpack.i.b16 %v304, %v304
    %v308 = vperm.slane %v306, 0
    %v309 = vunpack.c.l.bf16 %v48
    %v310 = vunpack.c.l.bf16 %v49
    %v311 = vunpack.c.l.bf16 %v50
    %v312 = vunpack.c.l.bf16 %v51
    %v313 = vunpack.c.l.bf16 %v52
    %v314 = vunpack.c.l.bf16 %v53
    %v315 = vunpack.c.l.bf16 %v54
    %v316 = vunpack.c.l.bf16 %v55
    %v317 = vunpack.c.l.bf16 %v56
    %v318 = vunpack.c.l.bf16 %v57
    %v319 = vunpack.c.l.bf16 %v58
    %v320 = vunpack.c.l.bf16 %v59
    %v321 = vunpack.c.l.bf16 %v60
    %v322 = vunpack.c.l.bf16 %v61
    %v323 = vunpack.c.l.bf16 %v62
    %v324 = vunpack.c.l.bf16 %v63
    %v325 = vunpack.c.l.bf16 %v64
    %v326 = vunpack.c.l.bf16 %v65
    %v327 = vunpack.c.l.bf16 %v66
    %v328 = vunpack.c.l.bf16 %v67
    %v329 = vunpack.c.l.bf16 %v68
    %v330 = vunpack.c.l.bf16 %v69
    %v331 = vunpack.c.l.bf16 %v70
    %v332 = vunpack.c.l.bf16 %v71
    %v333 = vunpack.c.l.bf16 %v72
    %v334 = vunpack.c.l.bf16 %v73
    %v335 = vunpack.c.l.bf16 %v74
    %v336 = vunpack.c.l.bf16 %v75
    %v337 = vunpack.c.l.bf16 %v76
    %v338 = vunpack.c.l.bf16 %v77
    %v339 = vunpack.c.l.bf16 %v78
    %v340 = vunpack.c.l.bf16 %v79
    %v341 = vunpack.c.l.bf16 %v80
    %v342 = vunpack.c.l.bf16 %v81
    %v343 = vunpack.c.l.bf16 %v82
    %v344 = vunpack.c.l.bf16 %v83
    %v345 = vunpack.c.l.bf16 %v84
    %v346 = vunpack.c.l.bf16 %v85
    %v347 = vunpack.c.l.bf16 %v86
    %v348 = vunpack.c.l.bf16 %v87
    %v349 = vunpack.c.l.bf16 %v88
    %v350 = vunpack.c.l.bf16 %v89
    %v351 = vunpack.c.l.bf16 %v90
    %v352 = vunpack.c.l.bf16 %v91
    %v353 = vunpack.c.l.bf16 %v92
    %v354 = vunpack.c.l.bf16 %v93
    %v355 = vunpack.c.l.bf16 %v94
    %v356 = vunpack.c.l.bf16 %v95
    %v357 = vunpack.c.l.bf16 %v96
    %v358 = vunpack.c.l.bf16 %v97
    %v359 = vunpack.c.l.bf16 %v98
    %v360 = vunpack.c.l.bf16 %v99
    %v361 = vunpack.c.l.bf16 %v100
    %v362 = vunpack.c.l.bf16 %v101
    %v363 = vunpack.c.l.bf16 %v102
    %v364 = vunpack.c.l.bf16 %v103
    %v365 = vunpack.c.l.bf16 %v104
    %v366 = vunpack.c.l.bf16 %v105
    %v367 = vunpack.c.l.bf16 %v106
    %v368 = vunpack.c.l.bf16 %v107
    %v369 = vunpack.c.l.bf16 %v108
    %v370 = vunpack.c.l.bf16 %v109
    %v371 = vunpack.c.l.bf16 %v110
    %v372 = vunpack.c.l.bf16 %v111
    %v373 = vunpack.c.l.bf16 %v112
    %v374 = vunpack.c.l.bf16 %v113
    %v375 = vunpack.c.l.bf16 %v114
    %v376 = vunpack.c.l.bf16 %v115
    %v377 = vunpack.c.l.bf16 %v116
    %v378 = vunpack.c.l.bf16 %v117
    %v379 = vunpack.c.l.bf16 %v118
    %v380 = vunpack.c.l.bf16 %v119
    %v381 = vunpack.c.l.bf16 %v120
    %v382 = vunpack.c.l.bf16 %v121
    %v383 = vunpack.c.l.bf16 %v122
    %v384 = vunpack.c.l.bf16 %v123
    %v385 = vunpack.c.l.bf16 %v124
    %v386 = vunpack.c.l.bf16 %v125
    %v387 = vunpack.c.l.bf16 %v126
    %v388 = vunpack.c.l.bf16 %v127
    %v389 = vunpack.c.l.bf16 %v128
    %v390 = vunpack.c.l.bf16 %v129
    %v391 = vunpack.c.l.bf16 %v130
    %v392 = vunpack.c.l.bf16 %v131
    %v393 = vunpack.c.l.bf16 %v132
    %v394 = vunpack.c.l.bf16 %v133
    %v395 = vunpack.c.l.bf16 %v134
    %v396 = vunpack.c.l.bf16 %v135
    %v397 = vunpack.c.l.bf16 %v136
    %v398 = vunpack.c.l.bf16 %v137
    %v399 = vunpack.c.l.bf16 %v138
    %v400 = vunpack.c.l.bf16 %v139
    %v401 = vunpack.c.l.bf16 %v140
    %v402 = vunpack.c.l.bf16 %v141
    %v403 = vunpack.c.l.bf16 %v142
    %v404 = vunpack.c.l.bf16 %v143
    %v405 = vunpack.c.l.bf16 %v144
    %v406 = vunpack.c.l.bf16 %v145
    %v407 = vunpack.c.l.bf16 %v146
    %v408 = vunpack.c.l.bf16 %v147
    %v409 = vunpack.c.l.bf16 %v148
    %v410 = vunpack.c.l.bf16 %v149
    %v411 = vunpack.c.l.bf16 %v150
    %v412 = vunpack.c.l.bf16 %v151
    %v413 = vunpack.c.l.bf16 %v152
    %v414 = vunpack.c.l.bf16 %v153
    %v415 = vunpack.c.l.bf16 %v154
    %v416 = vunpack.c.l.bf16 %v155
    %v417 = vunpack.c.l.bf16 %v156
    %v418 = vunpack.c.l.bf16 %v157
    %v419 = vunpack.c.l.bf16 %v158
    %v420 = vunpack.c.l.bf16 %v159
    %v421 = vunpack.c.l.bf16 %v160
    %v422 = vunpack.c.l.bf16 %v161
    %v423 = vunpack.c.l.bf16 %v162
    %v424 = vunpack.c.l.bf16 %v163
    %v425 = vunpack.c.l.bf16 %v164
    %v426 = vunpack.c.l.bf16 %v165
    %v427 = vunpack.c.l.bf16 %v166
    %v428 = vunpack.c.l.bf16 %v167
    %v429 = vunpack.c.l.bf16 %v168
    %v430 = vunpack.c.l.bf16 %v169
    %v431 = vunpack.c.l.bf16 %v170
    %v432 = vunpack.c.l.bf16 %v171
    %v433 = vunpack.c.l.bf16 %v172
    %v434 = vunpack.c.l.bf16 %v173
    %v435 = vunpack.c.l.bf16 %v174
    %v436 = vunpack.c.l.bf16 %v175
    %v437 = vunpack.c.l.bf16 %v176
    %v438 = vunpack.c.l.bf16 %v177
    %v439 = vunpack.c.l.bf16 %v178
    %v440 = vunpack.c.l.bf16 %v179
    %v441 = vunpack.c.l.bf16 %v180
    %v442 = vunpack.c.l.bf16 %v181
    %v443 = vunpack.c.l.bf16 %v182
    %v444 = vunpack.c.l.bf16 %v183
    %v445 = vunpack.c.l.bf16 %v184
    %v446 = vunpack.c.l.bf16 %v185
    %v447 = vunpack.c.l.bf16 %v186
    %v448 = vunpack.c.l.bf16 %v187
    %v449 = vunpack.c.l.bf16 %v188
    %v450 = vunpack.c.l.bf16 %v189
    %v451 = vunpack.c.l.bf16 %v190
    %v452 = vunpack.c.l.bf16 %v191
    %v453 = vunpack.c.l.bf16 %v192
    %v454 = vunpack.c.l.bf16 %v193
    %v455 = vunpack.c.l.bf16 %v194
    %v456 = vunpack.c.l.bf16 %v195
    %v457 = vunpack.c.l.bf16 %v196
    %v458 = vunpack.c.l.bf16 %v197
    %v459 = vunpack.c.l.bf16 %v198
    %v460 = vunpack.c.l.bf16 %v199
    %v461 = vunpack.c.l.bf16 %v200
    %v462 = vunpack.c.l.bf16 %v201
    %v463 = vunpack.c.l.bf16 %v202
    %v464 = vunpack.c.l.bf16 %v203
    %v465 = vunpack.c.l.bf16 %v204
    %v466 = vunpack.c.l.bf16 %v205
    %v467 = vunpack.c.l.bf16 %v206
    %v468 = vunpack.c.l.bf16 %v207
    %v469 = vunpack.c.l.bf16 %v208
    %v470 = vunpack.c.l.bf16 %v209
    %v471 = vunpack.c.l.bf16 %v210
    %v472 = vunpack.c.l.bf16 %v211
    %v473 = vunpack.c.l.bf16 %v212
    %v474 = vunpack.c.l.bf16 %v213
    %v475 = vunpack.c.l.bf16 %v214
    %v476 = vunpack.c.l.bf16 %v215
    %v477 = vunpack.c.l.bf16 %v216
    %v478 = vunpack.c.l.bf16 %v217
    %v479 = vunpack.c.l.bf16 %v218
    %v480 = vunpack.c.l.bf16 %v219
    %v481 = vunpack.c.l.bf16 %v220
    %v482 = vunpack.c.l.bf16 %v221
    %v483 = vunpack.c.l.bf16 %v222
    %v484 = vunpack.c.l.bf16 %v223
    %v485 = vunpack.c.l.bf16 %v224
    %v486 = vunpack.c.l.bf16 %v225
    %v487 = vunpack.c.l.bf16 %v226
    %v488 = vunpack.c.l.bf16 %v227
    %v489 = vunpack.c.l.bf16 %v228
    %v490 = vunpack.c.l.bf16 %v229
    %v491 = vunpack.c.l.bf16 %v230
    %v492 = vunpack.c.l.bf16 %v231
    %v493 = vunpack.c.l.bf16 %v232
    %v494 = vunpack.c.l.bf16 %v233
    %v495 = vunpack.c.l.bf16 %v234
    %v496 = vunpack.c.l.bf16 %v235
    %v497 = vunpack.c.l.bf16 %v236
    %v498 = vunpack.c.l.bf16 %v237
    %v499 = vunpack.c.l.bf16 %v238
    %v500 = vunpack.c.l.bf16 %v239
    %v501 = vunpack.c.l.bf16 %v240
    %v502 = vunpack.c.l.bf16 %v241
    %v503 = vunpack.c.l.bf16 %v242
    %v504 = vunpack.c.l.bf16 %v243
    %v505 = vunpack.c.l.bf16 %v244
    %v506 = vunpack.c.l.bf16 %v245
    %v507 = vunpack.c.l.bf16 %v246
    %v508 = vunpack.c.l.bf16 %v247
    %v509 = vunpack.c.l.bf16 %v248
    %v510 = vunpack.c.l.bf16 %v249
    %v511 = vunpack.c.l.bf16 %v250
    %v512 = vunpack.c.l.bf16 %v251
    %v513 = vunpack.c.l.bf16 %v252
    %v514 = vunpack.c.l.bf16 %v253
    %v515 = vunpack.c.l.bf16 %v254
    %v516 = vunpack.c.l.bf16 %v255
    %v517 = vunpack.c.l.bf16 %v256
    %v518 = vunpack.c.l.bf16 %v257
    %v519 = vunpack.c.l.bf16 %v258
    %v520 = vunpack.c.l.bf16 %v259
    %v521 = vunpack.c.l.bf16 %v260
    %v522 = vunpack.c.l.bf16 %v261
    %v523 = vunpack.c.l.bf16 %v262
    %v524 = vunpack.c.l.bf16 %v263
    %v525 = vunpack.c.l.bf16 %v264
    %v526 = vunpack.c.l.bf16 %v265
    %v527 = vunpack.c.l.bf16 %v266
    %v528 = vunpack.c.l.bf16 %v267
    %v529 = vunpack.c.l.bf16 %v268
    %v530 = vunpack.c.l.bf16 %v269
    %v531 = vunpack.c.l.bf16 %v270
    %v532 = vunpack.c.l.bf16 %v271
    %v533 = vunpack.c.l.bf16 %v272
    %v534 = vunpack.c.l.bf16 %v273
    %v535 = vunpack.c.l.bf16 %v274
    %v536 = vunpack.c.l.bf16 %v275
    %v537 = vunpack.c.l.bf16 %v276
    %v538 = vunpack.c.l.bf16 %v277
    %v539 = vunpack.c.l.bf16 %v278
    %v540 = vunpack.c.l.bf16 %v279
    %v541 = vunpack.c.l.bf16 %v280
    %v542 = vunpack.c.l.bf16 %v281
    %v543 = vunpack.c.l.bf16 %v282
    %v544 = vunpack.c.l.bf16 %v283
    %v545 = vunpack.c.l.bf16 %v284
    %v546 = vunpack.c.l.bf16 %v285
    %v547 = vunpack.c.l.bf16 %v286
    %v548 = vunpack.c.l.bf16 %v287
    %v549 = vunpack.c.l.bf16 %v288
    %v550 = vunpack.c.l.bf16 %v289
    %v551 = vunpack.c.l.bf16 %v290
    %v552 = vunpack.c.l.bf16 %v291
    %v553 = vunpack.c.l.bf16 %v292
    %v554 = vunpack.c.l.bf16 %v293
    %v555 = vunpack.c.l.bf16 %v294
    %v556 = vunpack.c.l.bf16 %v295
    %v557 = vunpack.c.l.bf16 %v296
    %v558 = vunpack.c.l.bf16 %v297
    %v559 = vunpack.c.l.bf16 %v298
    %v560 = vunpack.c.l.bf16 %v299
    %v561 = vunpack.c.l.bf16 %v300
    %v562 = vunpack.c.l.bf16 %v301
    %v563 = vunpack.c.l.bf16 %v302
    %v564 = vunpack.c.l.bf16 %v303
    %v565 = vunpack.c.l.bf16 %v308
    %v566 = vadd.f32 %v309, %v565
    %v567 = vadd.f32 %v310, %v565
    %v568 = vadd.f32 %v311, %v565
    %v569 = vadd.f32 %v312, %v565
    %v570 = vadd.f32 %v313, %v565
    %v571 = vadd.f32 %v314, %v565
    %v572 = vadd.f32 %v315, %v565
    %v573 = vadd.f32 %v316, %v565
    %v574 = vadd.f32 %v317, %v565
    %v575 = vadd.f32 %v318, %v565
    %v576 = vadd.f32 %v319, %v565
    %v577 = vadd.f32 %v320, %v565
    %v578 = vadd.f32 %v321, %v565
    %v579 = vadd.f32 %v322, %v565
    %v580 = vadd.f32 %v323, %v565
    %v581 = vadd.f32 %v324, %v565
    %v582 = vadd.f32 %v325, %v565
    %v583 = vadd.f32 %v326, %v565
    %v584 = vadd.f32 %v327, %v565
    %v585 = vadd.f32 %v328, %v565
    %v586 = vadd.f32 %v329, %v565
    %v587 = vadd.f32 %v330, %v565
    %v588 = vadd.f32 %v331, %v565
    %v589 = vadd.f32 %v332, %v565
    %v590 = vadd.f32 %v333, %v565
    %v591 = vadd.f32 %v334, %v565
    %v592 = vadd.f32 %v335, %v565
    %v593 = vadd.f32 %v336, %v565
    %v594 = vadd.f32 %v337, %v565
    %v595 = vadd.f32 %v338, %v565
    %v596 = vadd.f32 %v339, %v565
    %v597 = vadd.f32 %v340, %v565
    %v598 = vadd.f32 %v341, %v565
    %v599 = vadd.f32 %v342, %v565
    %v600 = vadd.f32 %v343, %v565
    %v601 = vadd.f32 %v344, %v565
    %v602 = vadd.f32 %v345, %v565
    %v603 = vadd.f32 %v346, %v565
    %v604 = vadd.f32 %v347, %v565
    %v605 = vadd.f32 %v348, %v565
    %v606 = vadd.f32 %v349, %v565
    %v607 = vadd.f32 %v350, %v565
    %v608 = vadd.f32 %v351, %v565
    %v609 = vadd.f32 %v352, %v565
    %v610 = vadd.f32 %v353, %v565
    %v611 = vadd.f32 %v354, %v565
    %v612 = vadd.f32 %v355, %v565
    %v613 = vadd.f32 %v356, %v565
    %v614 = vadd.f32 %v357, %v565
    %v615 = vadd.f32 %v358, %v565
    %v616 = vadd.f32 %v359, %v565
    %v617 = vadd.f32 %v360, %v565
    %v618 = vadd.f32 %v361, %v565
    %v619 = vadd.f32 %v362, %v565
    %v620 = vadd.f32 %v363, %v565
    %v621 = vadd.f32 %v364, %v565
    %v622 = vadd.f32 %v365, %v565
    %v623 = vadd.f32 %v366, %v565
    %v624 = vadd.f32 %v367, %v565
    %v625 = vadd.f32 %v368, %v565
    %v626 = vadd.f32 %v369, %v565
    %v627 = vadd.f32 %v370, %v565
    %v628 = vadd.f32 %v371, %v565
    %v629 = vadd.f32 %v372, %v565
    %v630 = vadd.f32 %v373, %v565
    %v631 = vadd.f32 %v374, %v565
    %v632 = vadd.f32 %v375, %v565
    %v633 = vadd.f32 %v376, %v565
    %v634 = vadd.f32 %v377, %v565
    %v635 = vadd.f32 %v378, %v565
    %v636 = vadd.f32 %v379, %v565
    %v637 = vadd.f32 %v380, %v565
    %v638 = vadd.f32 %v381, %v565
    %v639 = vadd.f32 %v382, %v565
    %v640 = vadd.f32 %v383, %v565
    %v641 = vadd.f32 %v384, %v565
    %v642 = vadd.f32 %v385, %v565
    %v643 = vadd.f32 %v386, %v565
    %v644 = vadd.f32 %v387, %v565
    %v645 = vadd.f32 %v388, %v565
    %v646 = vadd.f32 %v389, %v565
    %v647 = vadd.f32 %v390, %v565
    %v648 = vadd.f32 %v391, %v565
    %v649 = vadd.f32 %v392, %v565
    %v650 = vadd.f32 %v393, %v565
    %v651 = vadd.f32 %v394, %v565
    %v652 = vadd.f32 %v395, %v565
    %v653 = vadd.f32 %v396, %v565
    %v654 = vadd.f32 %v397, %v565
    %v655 = vadd.f32 %v398, %v565
    %v656 = vadd.f32 %v399, %v565
    %v657 = vadd.f32 %v400, %v565
    %v658 = vadd.f32 %v401, %v565
    %v659 = vadd.f32 %v402, %v565
    %v660 = vadd.f32 %v403, %v565
    %v661 = vadd.f32 %v404, %v565
    %v662 = vadd.f32 %v405, %v565
    %v663 = vadd.f32 %v406, %v565
    %v664 = vadd.f32 %v407, %v565
    %v665 = vadd.f32 %v408, %v565
    %v666 = vadd.f32 %v409, %v565
    %v667 = vadd.f32 %v410, %v565
    %v668 = vadd.f32 %v411, %v565
    %v669 = vadd.f32 %v412, %v565
    %v670 = vadd.f32 %v413, %v565
    %v671 = vadd.f32 %v414, %v565
    %v672 = vadd.f32 %v415, %v565
    %v673 = vadd.f32 %v416, %v565
    %v674 = vadd.f32 %v417, %v565
    %v675 = vadd.f32 %v418, %v565
    %v676 = vadd.f32 %v419, %v565
    %v677 = vadd.f32 %v420, %v565
    %v678 = vadd.f32 %v421, %v565
    %v679 = vadd.f32 %v422, %v565
    %v680 = vadd.f32 %v423, %v565
    %v681 = vadd.f32 %v424, %v565
    %v682 = vadd.f32 %v425, %v565
    %v683 = vadd.f32 %v426, %v565
    %v684 = vadd.f32 %v427, %v565
    %v685 = vadd.f32 %v428, %v565
    %v686 = vadd.f32 %v429, %v565
    %v687 = vadd.f32 %v430, %v565
    %v688 = vadd.f32 %v431, %v565
    %v689 = vadd.f32 %v432, %v565
    %v690 = vadd.f32 %v433, %v565
    %v691 = vadd.f32 %v434, %v565
    %v692 = vadd.f32 %v435, %v565
    %v693 = vadd.f32 %v436, %v565
    %v694 = vadd.f32 %v437, %v565
    %v695 = vadd.f32 %v438, %v565
    %v696 = vadd.f32 %v439, %v565
    %v697 = vadd.f32 %v440, %v565
    %v698 = vadd.f32 %v441, %v565
    %v699 = vadd.f32 %v442, %v565
    %v700 = vadd.f32 %v443, %v565
    %v701 = vadd.f32 %v444, %v565
    %v702 = vadd.f32 %v445, %v565
    %v703 = vadd.f32 %v446, %v565
    %v704 = vadd.f32 %v447, %v565
    %v705 = vadd.f32 %v448, %v565
    %v706 = vadd.f32 %v449, %v565
    %v707 = vadd.f32 %v450, %v565
    %v708 = vadd.f32 %v451, %v565
    %v709 = vadd.f32 %v452, %v565
    %v710 = vadd.f32 %v453, %v565
    %v711 = vadd.f32 %v454, %v565
    %v712 = vadd.f32 %v455, %v565
    %v713 = vadd.f32 %v456, %v565
    %v714 = vadd.f32 %v457, %v565
    %v715 = vadd.f32 %v458, %v565
    %v716 = vadd.f32 %v459, %v565
    %v717 = vadd.f32 %v460, %v565
    %v718 = vadd.f32 %v461, %v565
    %v719 = vadd.f32 %v462, %v565
    %v720 = vadd.f32 %v463, %v565
    %v721 = vadd.f32 %v464, %v565
    %v722 = vadd.f32 %v465, %v565
    %v723 = vadd.f32 %v466, %v565
    %v724 = vadd.f32 %v467, %v565
    %v725 = vadd.f32 %v468, %v565
    %v726 = vadd.f32 %v469, %v565
    %v727 = vadd.f32 %v470, %v565
    %v728 = vadd.f32 %v471, %v565
    %v729 = vadd.f32 %v472, %v565
    %v730 = vadd.f32 %v473, %v565
    %v731 = vadd.f32 %v474, %v565
    %v732 = vadd.f32 %v475, %v565
    %v733 = vadd.f32 %v476, %v565
    %v734 = vadd.f32 %v477, %v565
    %v735 = vadd.f32 %v478, %v565
    %v736 = vadd.f32 %v479, %v565
    %v737 = vadd.f32 %v480, %v565
    %v738 = vadd.f32 %v481, %v565
    %v739 = vadd.f32 %v482, %v565
    %v740 = vadd.f32 %v483, %v565
    %v741 = vadd.f32 %v484, %v565
    %v742 = vadd.f32 %v485, %v565
    %v743 = vadd.f32 %v486, %v565
    %v744 = vadd.f32 %v487, %v565
    %v745 = vadd.f32 %v488, %v565
    %v746 = vadd.f32 %v489, %v565
    %v747 = vadd.f32 %v490, %v565
    %v748 = vadd.f32 %v491, %v565
    %v749 = vadd.f32 %v492, %v565
    %v750 = vadd.f32 %v493, %v565
    %v751 = vadd.f32 %v494, %v565
    %v752 = vadd.f32 %v495, %v565
    %v753 = vadd.f32 %v496, %v565
    %v754 = vadd.f32 %v497, %v565
    %v755 = vadd.f32 %v498, %v565
    %v756 = vadd.f32 %v499, %v565
    %v757 = vadd.f32 %v500, %v565
    %v758 = vadd.f32 %v501, %v565
    %v759 = vadd.f32 %v502, %v565
    %v760 = vadd.f32 %v503, %v565
    %v761 = vadd.f32 %v504, %v565
    %v762 = vadd.f32 %v505, %v565
    %v763 = vadd.f32 %v506, %v565
    %v764 = vadd.f32 %v507, %v565
    %v765 = vadd.f32 %v508, %v565
    %v766 = vadd.f32 %v509, %v565
    %v767 = vadd.f32 %v510, %v565
    %v768 = vadd.f32 %v511, %v565
    %v769 = vadd.f32 %v512, %v565
    %v770 = vadd.f32 %v513, %v565
    %v771 = vadd.f32 %v514, %v565
    %v772 = vadd.f32 %v515, %v565
    %v773 = vadd.f32 %v516, %v565
    %v774 = vadd.f32 %v517, %v565
    %v775 = vadd.f32 %v518, %v565
    %v776 = vadd.f32 %v519, %v565
    %v777 = vadd.f32 %v520, %v565
    %v778 = vadd.f32 %v521, %v565
    %v779 = vadd.f32 %v522, %v565
    %v780 = vadd.f32 %v523, %v565
    %v781 = vadd.f32 %v524, %v565
    %v782 = vadd.f32 %v525, %v565
    %v783 = vadd.f32 %v526, %v565
    %v784 = vadd.f32 %v527, %v565
    %v785 = vadd.f32 %v528, %v565
    %v786 = vadd.f32 %v529, %v565
    %v787 = vadd.f32 %v530, %v565
    %v788 = vadd.f32 %v531, %v565
    %v789 = vadd.f32 %v532, %v565
    %v790 = vadd.f32 %v533, %v565
    %v791 = vadd.f32 %v534, %v565
    %v792 = vadd.f32 %v535, %v565
    %v793 = vadd.f32 %v536, %v565
    %v794 = vadd.f32 %v537, %v565
    %v795 = vadd.f32 %v538, %v565
    %v796 = vadd.f32 %v539, %v565
    %v797 = vadd.f32 %v540, %v565
    %v798 = vadd.f32 %v541, %v565
    %v799 = vadd.f32 %v542, %v565
    %v800 = vadd.f32 %v543, %v565
    %v801 = vadd.f32 %v544, %v565
    %v802 = vadd.f32 %v545, %v565
    %v803 = vadd.f32 %v546, %v565
    %v804 = vadd.f32 %v547, %v565
    %v805 = vadd.f32 %v548, %v565
    %v806 = vadd.f32 %v549, %v565
    %v807 = vadd.f32 %v550, %v565
    %v808 = vadd.f32 %v551, %v565
    %v809 = vadd.f32 %v552, %v565
    %v810 = vadd.f32 %v553, %v565
    %v811 = vadd.f32 %v554, %v565
    %v812 = vadd.f32 %v555, %v565
    %v813 = vadd.f32 %v556, %v565
    %v814 = vadd.f32 %v557, %v565
    %v815 = vadd.f32 %v558, %v565
    %v816 = vadd.f32 %v559, %v565
    %v817 = vadd.f32 %v560, %v565
    %v818 = vadd.f32 %v561, %v565
    %v819 = vadd.f32 %v562, %v565
    %v820 = vadd.f32 %v563, %v565
    %v821 = vadd.f32 %v564, %v565
    %v822 = vpack.c.bf16 %v566, %v566
    %v823 = vpack.c.bf16 %v567, %v567
    %v824 = vpack.c.bf16 %v568, %v568
    %v825 = vpack.c.bf16 %v569, %v569
    %v826 = vpack.c.bf16 %v570, %v570
    %v827 = vpack.c.bf16 %v571, %v571
    %v828 = vpack.c.bf16 %v572, %v572
    %v829 = vpack.c.bf16 %v573, %v573
    %v830 = vpack.c.bf16 %v574, %v574
    %v831 = vpack.c.bf16 %v575, %v575
    %v832 = vpack.c.bf16 %v576, %v576
    %v833 = vpack.c.bf16 %v577, %v577
    %v834 = vpack.c.bf16 %v578, %v578
    %v835 = vpack.c.bf16 %v579, %v579
    %v836 = vpack.c.bf16 %v580, %v580
    %v837 = vpack.c.bf16 %v581, %v581
    %v838 = vpack.c.bf16 %v582, %v582
    %v839 = vpack.c.bf16 %v583, %v583
    %v840 = vpack.c.bf16 %v584, %v584
    %v841 = vpack.c.bf16 %v585, %v585
    %v842 = vpack.c.bf16 %v586, %v586
    %v843 = vpack.c.bf16 %v587, %v587
    %v844 = vpack.c.bf16 %v588, %v588
    %v845 = vpack.c.bf16 %v589, %v589
    %v846 = vpack.c.bf16 %v590, %v590
    %v847 = vpack.c.bf16 %v591, %v591
    %v848 = vpack.c.bf16 %v592, %v592
    %v849 = vpack.c.bf16 %v593, %v593
    %v850 = vpack.c.bf16 %v594, %v594
    %v851 = vpack.c.bf16 %v595, %v595
    %v852 = vpack.c.bf16 %v596, %v596
    %v853 = vpack.c.bf16 %v597, %v597
    %v854 = vpack.c.bf16 %v598, %v598
    %v855 = vpack.c.bf16 %v599, %v599
    %v856 = vpack.c.bf16 %v600, %v600
    %v857 = vpack.c.bf16 %v601, %v601
    %v858 = vpack.c.bf16 %v602, %v602
    %v859 = vpack.c.bf16 %v603, %v603
    %v860 = vpack.c.bf16 %v604, %v604
    %v861 = vpack.c.bf16 %v605, %v605
    %v862 = vpack.c.bf16 %v606, %v606
    %v863 = vpack.c.bf16 %v607, %v607
    %v864 = vpack.c.bf16 %v608, %v608
    %v865 = vpack.c.bf16 %v609, %v609
    %v866 = vpack.c.bf16 %v610, %v610
    %v867 = vpack.c.bf16 %v611, %v611
    %v868 = vpack.c.bf16 %v612, %v612
    %v869 = vpack.c.bf16 %v613, %v613
    %v870 = vpack.c.bf16 %v614, %v614
    %v871 = vpack.c.bf16 %v615, %v615
    %v872 = vpack.c.bf16 %v616, %v616
    %v873 = vpack.c.bf16 %v617, %v617
    %v874 = vpack.c.bf16 %v618, %v618
    %v875 = vpack.c.bf16 %v619, %v619
    %v876 = vpack.c.bf16 %v620, %v620
    %v877 = vpack.c.bf16 %v621, %v621
    %v878 = vpack.c.bf16 %v622, %v622
    %v879 = vpack.c.bf16 %v623, %v623
    %v880 = vpack.c.bf16 %v624, %v624
    %v881 = vpack.c.bf16 %v625, %v625
    %v882 = vpack.c.bf16 %v626, %v626
    %v883 = vpack.c.bf16 %v627, %v627
    %v884 = vpack.c.bf16 %v628, %v628
    %v885 = vpack.c.bf16 %v629, %v629
    %v886 = vpack.c.bf16 %v630, %v630
    %v887 = vpack.c.bf16 %v631, %v631
    %v888 = vpack.c.bf16 %v632, %v632
    %v889 = vpack.c.bf16 %v633, %v633
    %v890 = vpack.c.bf16 %v634, %v634
    %v891 = vpack.c.bf16 %v635, %v635
    %v892 = vpack.c.bf16 %v636, %v636
    %v893 = vpack.c.bf16 %v637, %v637
    %v894 = vpack.c.bf16 %v638, %v638
    %v895 = vpack.c.bf16 %v639, %v639
    %v896 = vpack.c.bf16 %v640, %v640
    %v897 = vpack.c.bf16 %v641, %v641
    %v898 = vpack.c.bf16 %v642, %v642
    %v899 = vpack.c.bf16 %v643, %v643
    %v900 = vpack.c.bf16 %v644, %v644
    %v901 = vpack.c.bf16 %v645, %v645
    %v902 = vpack.c.bf16 %v646, %v646
    %v903 = vpack.c.bf16 %v647, %v647
    %v904 = vpack.c.bf16 %v648, %v648
    %v905 = vpack.c.bf16 %v649, %v649
    %v906 = vpack.c.bf16 %v650, %v650
    %v907 = vpack.c.bf16 %v651, %v651
    %v908 = vpack.c.bf16 %v652, %v652
    %v909 = vpack.c.bf16 %v653, %v653
    %v910 = vpack.c.bf16 %v654, %v654
    %v911 = vpack.c.bf16 %v655, %v655
    %v912 = vpack.c.bf16 %v656, %v656
    %v913 = vpack.c.bf16 %v657, %v657
    %v914 = vpack.c.bf16 %v658, %v658
    %v915 = vpack.c.bf16 %v659, %v659
    %v916 = vpack.c.bf16 %v660, %v660
    %v917 = vpack.c.bf16 %v661, %v661
    %v918 = vpack.c.bf16 %v662, %v662
    %v919 = vpack.c.bf16 %v663, %v663
    %v920 = vpack.c.bf16 %v664, %v664
    %v921 = vpack.c.bf16 %v665, %v665
    %v922 = vpack.c.bf16 %v666, %v666
    %v923 = vpack.c.bf16 %v667, %v667
    %v924 = vpack.c.bf16 %v668, %v668
    %v925 = vpack.c.bf16 %v669, %v669
    %v926 = vpack.c.bf16 %v670, %v670
    %v927 = vpack.c.bf16 %v671, %v671
    %v928 = vpack.c.bf16 %v672, %v672
    %v929 = vpack.c.bf16 %v673, %v673
    %v930 = vpack.c.bf16 %v674, %v674
    %v931 = vpack.c.bf16 %v675, %v675
    %v932 = vpack.c.bf16 %v676, %v676
    %v933 = vpack.c.bf16 %v677, %v677
    %v934 = vpack.c.bf16 %v678, %v678
    %v935 = vpack.c.bf16 %v679, %v679
    %v936 = vpack.c.bf16 %v680, %v680
    %v937 = vpack.c.bf16 %v681, %v681
    %v938 = vpack.c.bf16 %v682, %v682
    %v939 = vpack.c.bf16 %v683, %v683
    %v940 = vpack.c.bf16 %v684, %v684
    %v941 = vpack.c.bf16 %v685, %v685
    %v942 = vpack.c.bf16 %v686, %v686
    %v943 = vpack.c.bf16 %v687, %v687
    %v944 = vpack.c.bf16 %v688, %v688
    %v945 = vpack.c.bf16 %v689, %v689
    %v946 = vpack.c.bf16 %v690, %v690
    %v947 = vpack.c.bf16 %v691, %v691
    %v948 = vpack.c.bf16 %v692, %v692
    %v949 = vpack.c.bf16 %v693, %v693
    %v950 = vpack.c.bf16 %v694, %v694
    %v951 = vpack.c.bf16 %v695, %v695
    %v952 = vpack.c.bf16 %v696, %v696
    %v953 = vpack.c.bf16 %v697, %v697
    %v954 = vpack.c.bf16 %v698, %v698
    %v955 = vpack.c.bf16 %v699, %v699
    %v956 = vpack.c.bf16 %v700, %v700
    %v957 = vpack.c.bf16 %v701, %v701
    %v958 = vpack.c.bf16 %v702, %v702
    %v959 = vpack.c.bf16 %v703, %v703
    %v960 = vpack.c.bf16 %v704, %v704
    %v961 = vpack.c.bf16 %v705, %v705
    %v962 = vpack.c.bf16 %v706, %v706
    %v963 = vpack.c.bf16 %v707, %v707
    %v964 = vpack.c.bf16 %v708, %v708
    %v965 = vpack.c.bf16 %v709, %v709
    %v966 = vpack.c.bf16 %v710, %v710
    %v967 = vpack.c.bf16 %v711, %v711
    %v968 = vpack.c.bf16 %v712, %v712
    %v969 = vpack.c.bf16 %v713, %v713
    %v970 = vpack.c.bf16 %v714, %v714
    %v971 = vpack.c.bf16 %v715, %v715
    %v972 = vpack.c.bf16 %v716, %v716
    %v973 = vpack.c.bf16 %v717, %v717
    %v974 = vpack.c.bf16 %v718, %v718
    %v975 = vpack.c.bf16 %v719, %v719
    %v976 = vpack.c.bf16 %v720, %v720
    %v977 = vpack.c.bf16 %v721, %v721
    %v978 = vpack.c.bf16 %v722, %v722
    %v979 = vpack.c.bf16 %v723, %v723
    %v980 = vpack.c.bf16 %v724, %v724
    %v981 = vpack.c.bf16 %v725, %v725
    %v982 = vpack.c.bf16 %v726, %v726
    %v983 = vpack.c.bf16 %v727, %v727
    %v984 = vpack.c.bf16 %v728, %v728
    %v985 = vpack.c.bf16 %v729, %v729
    %v986 = vpack.c.bf16 %v730, %v730
    %v987 = vpack.c.bf16 %v731, %v731
    %v988 = vpack.c.bf16 %v732, %v732
    %v989 = vpack.c.bf16 %v733, %v733
    %v990 = vpack.c.bf16 %v734, %v734
    %v991 = vpack.c.bf16 %v735, %v735
    %v992 = vpack.c.bf16 %v736, %v736
    %v993 = vpack.c.bf16 %v737, %v737
    %v994 = vpack.c.bf16 %v738, %v738
    %v995 = vpack.c.bf16 %v739, %v739
    %v996 = vpack.c.bf16 %v740, %v740
    %v997 = vpack.c.bf16 %v741, %v741
    %v998 = vpack.c.bf16 %v742, %v742
    %v999 = vpack.c.bf16 %v743, %v743
    %v1000 = vpack.c.bf16 %v744, %v744
    %v1001 = vpack.c.bf16 %v745, %v745
    %v1002 = vpack.c.bf16 %v746, %v746
    %v1003 = vpack.c.bf16 %v747, %v747
    %v1004 = vpack.c.bf16 %v748, %v748
    %v1005 = vpack.c.bf16 %v749, %v749
    %v1006 = vpack.c.bf16 %v750, %v750
    %v1007 = vpack.c.bf16 %v751, %v751
    %v1008 = vpack.c.bf16 %v752, %v752
    %v1009 = vpack.c.bf16 %v753, %v753
    %v1010 = vpack.c.bf16 %v754, %v754
    %v1011 = vpack.c.bf16 %v755, %v755
    %v1012 = vpack.c.bf16 %v756, %v756
    %v1013 = vpack.c.bf16 %v757, %v757
    %v1014 = vpack.c.bf16 %v758, %v758
    %v1015 = vpack.c.bf16 %v759, %v759
    %v1016 = vpack.c.bf16 %v760, %v760
    %v1017 = vpack.c.bf16 %v761, %v761
    %v1018 = vpack.c.bf16 %v762, %v762
    %v1019 = vpack.c.bf16 %v763, %v763
    %v1020 = vpack.c.bf16 %v764, %v764
    %v1021 = vpack.c.bf16 %v765, %v765
    %v1022 = vpack.c.bf16 %v766, %v766
    %v1023 = vpack.c.bf16 %v767, %v767
    %v1024 = vpack.c.bf16 %v768, %v768
    %v1025 = vpack.c.bf16 %v769, %v769
    %v1026 = vpack.c.bf16 %v770, %v770
    %v1027 = vpack.c.bf16 %v771, %v771
    %v1028 = vpack.c.bf16 %v772, %v772
    %v1029 = vpack.c.bf16 %v773, %v773
    %v1030 = vpack.c.bf16 %v774, %v774
    %v1031 = vpack.c.bf16 %v775, %v775
    %v1032 = vpack.c.bf16 %v776, %v776
    %v1033 = vpack.c.bf16 %v777, %v777
    %v1034 = vpack.c.bf16 %v778, %v778
    %v1035 = vpack.c.bf16 %v779, %v779
    %v1036 = vpack.c.bf16 %v780, %v780
    %v1037 = vpack.c.bf16 %v781, %v781
    %v1038 = vpack.c.bf16 %v782, %v782
    %v1039 = vpack.c.bf16 %v783, %v783
    %v1040 = vpack.c.bf16 %v784, %v784
    %v1041 = vpack.c.bf16 %v785, %v785
    %v1042 = vpack.c.bf16 %v786, %v786
    %v1043 = vpack.c.bf16 %v787, %v787
    %v1044 = vpack.c.bf16 %v788, %v788
    %v1045 = vpack.c.bf16 %v789, %v789
    %v1046 = vpack.c.bf16 %v790, %v790
    %v1047 = vpack.c.bf16 %v791, %v791
    %v1048 = vpack.c.bf16 %v792, %v792
    %v1049 = vpack.c.bf16 %v793, %v793
    %v1050 = vpack.c.bf16 %v794, %v794
    %v1051 = vpack.c.bf16 %v795, %v795
    %v1052 = vpack.c.bf16 %v796, %v796
    %v1053 = vpack.c.bf16 %v797, %v797
    %v1054 = vpack.c.bf16 %v798, %v798
    %v1055 = vpack.c.bf16 %v799, %v799
    %v1056 = vpack.c.bf16 %v800, %v800
    %v1057 = vpack.c.bf16 %v801, %v801
    %v1058 = vpack.c.bf16 %v802, %v802
    %v1059 = vpack.c.bf16 %v803, %v803
    %v1060 = vpack.c.bf16 %v804, %v804
    %v1061 = vpack.c.bf16 %v805, %v805
    %v1062 = vpack.c.bf16 %v806, %v806
    %v1063 = vpack.c.bf16 %v807, %v807
    %v1064 = vpack.c.bf16 %v808, %v808
    %v1065 = vpack.c.bf16 %v809, %v809
    %v1066 = vpack.c.bf16 %v810, %v810
    %v1067 = vpack.c.bf16 %v811, %v811
    %v1068 = vpack.c.bf16 %v812, %v812
    %v1069 = vpack.c.bf16 %v813, %v813
    %v1070 = vpack.c.bf16 %v814, %v814
    %v1071 = vpack.c.bf16 %v815, %v815
    %v1072 = vpack.c.bf16 %v816, %v816
    %v1073 = vpack.c.bf16 %v817, %v817
    %v1074 = vpack.c.bf16 %v818, %v818
    %v1075 = vpack.c.bf16 %v819, %v819
    %v1076 = vpack.c.bf16 %v820, %v820
    %v1077 = vpack.c.bf16 %v821, %v821
    %v1078 = vunpack.c.l.bf16 %v822
    %v1079 = vunpack.c.l.bf16 %v823
    %v1080 = vunpack.c.l.bf16 %v824
    %v1081 = vunpack.c.l.bf16 %v825
    %v1082 = vunpack.c.l.bf16 %v826
    %v1083 = vunpack.c.l.bf16 %v827
    %v1084 = vunpack.c.l.bf16 %v828
    %v1085 = vunpack.c.l.bf16 %v829
    %v1086 = vunpack.c.l.bf16 %v830
    %v1087 = vunpack.c.l.bf16 %v831
    %v1088 = vunpack.c.l.bf16 %v832
    %v1089 = vunpack.c.l.bf16 %v833
    %v1090 = vunpack.c.l.bf16 %v834
    %v1091 = vunpack.c.l.bf16 %v835
    %v1092 = vunpack.c.l.bf16 %v836
    %v1093 = vunpack.c.l.bf16 %v837
    %v1094 = vunpack.c.l.bf16 %v838
    %v1095 = vunpack.c.l.bf16 %v839
    %v1096 = vunpack.c.l.bf16 %v840
    %v1097 = vunpack.c.l.bf16 %v841
    %v1098 = vunpack.c.l.bf16 %v842
    %v1099 = vunpack.c.l.bf16 %v843
    %v1100 = vunpack.c.l.bf16 %v844
    %v1101 = vunpack.c.l.bf16 %v845
    %v1102 = vunpack.c.l.bf16 %v846
    %v1103 = vunpack.c.l.bf16 %v847
    %v1104 = vunpack.c.l.bf16 %v848
    %v1105 = vunpack.c.l.bf16 %v849
    %v1106 = vunpack.c.l.bf16 %v850
    %v1107 = vunpack.c.l.bf16 %v851
    %v1108 = vunpack.c.l.bf16 %v852
    %v1109 = vunpack.c.l.bf16 %v853
    %v1110 = vunpack.c.l.bf16 %v854
    %v1111 = vunpack.c.l.bf16 %v855
    %v1112 = vunpack.c.l.bf16 %v856
    %v1113 = vunpack.c.l.bf16 %v857
    %v1114 = vunpack.c.l.bf16 %v858
    %v1115 = vunpack.c.l.bf16 %v859
    %v1116 = vunpack.c.l.bf16 %v860
    %v1117 = vunpack.c.l.bf16 %v861
    %v1118 = vunpack.c.l.bf16 %v862
    %v1119 = vunpack.c.l.bf16 %v863
    %v1120 = vunpack.c.l.bf16 %v864
    %v1121 = vunpack.c.l.bf16 %v865
    %v1122 = vunpack.c.l.bf16 %v866
    %v1123 = vunpack.c.l.bf16 %v867
    %v1124 = vunpack.c.l.bf16 %v868
    %v1125 = vunpack.c.l.bf16 %v869
    %v1126 = vunpack.c.l.bf16 %v870
    %v1127 = vunpack.c.l.bf16 %v871
    %v1128 = vunpack.c.l.bf16 %v872
    %v1129 = vunpack.c.l.bf16 %v873
    %v1130 = vunpack.c.l.bf16 %v874
    %v1131 = vunpack.c.l.bf16 %v875
    %v1132 = vunpack.c.l.bf16 %v876
    %v1133 = vunpack.c.l.bf16 %v877
    %v1134 = vunpack.c.l.bf16 %v878
    %v1135 = vunpack.c.l.bf16 %v879
    %v1136 = vunpack.c.l.bf16 %v880
    %v1137 = vunpack.c.l.bf16 %v881
    %v1138 = vunpack.c.l.bf16 %v882
    %v1139 = vunpack.c.l.bf16 %v883
    %v1140 = vunpack.c.l.bf16 %v884
    %v1141 = vunpack.c.l.bf16 %v885
    %v1142 = vunpack.c.l.bf16 %v886
    %v1143 = vunpack.c.l.bf16 %v887
    %v1144 = vunpack.c.l.bf16 %v888
    %v1145 = vunpack.c.l.bf16 %v889
    %v1146 = vunpack.c.l.bf16 %v890
    %v1147 = vunpack.c.l.bf16 %v891
    %v1148 = vunpack.c.l.bf16 %v892
    %v1149 = vunpack.c.l.bf16 %v893
    %v1150 = vunpack.c.l.bf16 %v894
    %v1151 = vunpack.c.l.bf16 %v895
    %v1152 = vunpack.c.l.bf16 %v896
    %v1153 = vunpack.c.l.bf16 %v897
    %v1154 = vunpack.c.l.bf16 %v898
    %v1155 = vunpack.c.l.bf16 %v899
    %v1156 = vunpack.c.l.bf16 %v900
    %v1157 = vunpack.c.l.bf16 %v901
    %v1158 = vunpack.c.l.bf16 %v902
    %v1159 = vunpack.c.l.bf16 %v903
    %v1160 = vunpack.c.l.bf16 %v904
    %v1161 = vunpack.c.l.bf16 %v905
    %v1162 = vunpack.c.l.bf16 %v906
    %v1163 = vunpack.c.l.bf16 %v907
    %v1164 = vunpack.c.l.bf16 %v908
    %v1165 = vunpack.c.l.bf16 %v909
    %v1166 = vunpack.c.l.bf16 %v910
    %v1167 = vunpack.c.l.bf16 %v911
    %v1168 = vunpack.c.l.bf16 %v912
    %v1169 = vunpack.c.l.bf16 %v913
    %v1170 = vunpack.c.l.bf16 %v914
    %v1171 = vunpack.c.l.bf16 %v915
    %v1172 = vunpack.c.l.bf16 %v916
    %v1173 = vunpack.c.l.bf16 %v917
    %v1174 = vunpack.c.l.bf16 %v918
    %v1175 = vunpack.c.l.bf16 %v919
    %v1176 = vunpack.c.l.bf16 %v920
    %v1177 = vunpack.c.l.bf16 %v921
    %v1178 = vunpack.c.l.bf16 %v922
    %v1179 = vunpack.c.l.bf16 %v923
    %v1180 = vunpack.c.l.bf16 %v924
    %v1181 = vunpack.c.l.bf16 %v925
    %v1182 = vunpack.c.l.bf16 %v926
    %v1183 = vunpack.c.l.bf16 %v927
    %v1184 = vunpack.c.l.bf16 %v928
    %v1185 = vunpack.c.l.bf16 %v929
    %v1186 = vunpack.c.l.bf16 %v930
    %v1187 = vunpack.c.l.bf16 %v931
    %v1188 = vunpack.c.l.bf16 %v932
    %v1189 = vunpack.c.l.bf16 %v933
    %v1190 = vunpack.c.l.bf16 %v934
    %v1191 = vunpack.c.l.bf16 %v935
    %v1192 = vunpack.c.l.bf16 %v936
    %v1193 = vunpack.c.l.bf16 %v937
    %v1194 = vunpack.c.l.bf16 %v938
    %v1195 = vunpack.c.l.bf16 %v939
    %v1196 = vunpack.c.l.bf16 %v940
    %v1197 = vunpack.c.l.bf16 %v941
    %v1198 = vunpack.c.l.bf16 %v942
    %v1199 = vunpack.c.l.bf16 %v943
    %v1200 = vunpack.c.l.bf16 %v944
    %v1201 = vunpack.c.l.bf16 %v945
    %v1202 = vunpack.c.l.bf16 %v946
    %v1203 = vunpack.c.l.bf16 %v947
    %v1204 = vunpack.c.l.bf16 %v948
    %v1205 = vunpack.c.l.bf16 %v949
    %v1206 = vunpack.c.l.bf16 %v950
    %v1207 = vunpack.c.l.bf16 %v951
    %v1208 = vunpack.c.l.bf16 %v952
    %v1209 = vunpack.c.l.bf16 %v953
    %v1210 = vunpack.c.l.bf16 %v954
    %v1211 = vunpack.c.l.bf16 %v955
    %v1212 = vunpack.c.l.bf16 %v956
    %v1213 = vunpack.c.l.bf16 %v957
    %v1214 = vunpack.c.l.bf16 %v958
    %v1215 = vunpack.c.l.bf16 %v959
    %v1216 = vunpack.c.l.bf16 %v960
    %v1217 = vunpack.c.l.bf16 %v961
    %v1218 = vunpack.c.l.bf16 %v962
    %v1219 = vunpack.c.l.bf16 %v963
    %v1220 = vunpack.c.l.bf16 %v964
    %v1221 = vunpack.c.l.bf16 %v965
    %v1222 = vunpack.c.l.bf16 %v966
    %v1223 = vunpack.c.l.bf16 %v967
    %v1224 = vunpack.c.l.bf16 %v968
    %v1225 = vunpack.c.l.bf16 %v969
    %v1226 = vunpack.c.l.bf16 %v970
    %v1227 = vunpack.c.l.bf16 %v971
    %v1228 = vunpack.c.l.bf16 %v972
    %v1229 = vunpack.c.l.bf16 %v973
    %v1230 = vunpack.c.l.bf16 %v974
    %v1231 = vunpack.c.l.bf16 %v975
    %v1232 = vunpack.c.l.bf16 %v976
    %v1233 = vunpack.c.l.bf16 %v977
    %v1234 = vunpack.c.l.bf16 %v978
    %v1235 = vunpack.c.l.bf16 %v979
    %v1236 = vunpack.c.l.bf16 %v980
    %v1237 = vunpack.c.l.bf16 %v981
    %v1238 = vunpack.c.l.bf16 %v982
    %v1239 = vunpack.c.l.bf16 %v983
    %v1240 = vunpack.c.l.bf16 %v984
    %v1241 = vunpack.c.l.bf16 %v985
    %v1242 = vunpack.c.l.bf16 %v986
    %v1243 = vunpack.c.l.bf16 %v987
    %v1244 = vunpack.c.l.bf16 %v988
    %v1245 = vunpack.c.l.bf16 %v989
    %v1246 = vunpack.c.l.bf16 %v990
    %v1247 = vunpack.c.l.bf16 %v991
    %v1248 = vunpack.c.l.bf16 %v992
    %v1249 = vunpack.c.l.bf16 %v993
    %v1250 = vunpack.c.l.bf16 %v994
    %v1251 = vunpack.c.l.bf16 %v995
    %v1252 = vunpack.c.l.bf16 %v996
    %v1253 = vunpack.c.l.bf16 %v997
    %v1254 = vunpack.c.l.bf16 %v998
    %v1255 = vunpack.c.l.bf16 %v999
    %v1256 = vunpack.c.l.bf16 %v1000
    %v1257 = vunpack.c.l.bf16 %v1001
    %v1258 = vunpack.c.l.bf16 %v1002
    %v1259 = vunpack.c.l.bf16 %v1003
    %v1260 = vunpack.c.l.bf16 %v1004
    %v1261 = vunpack.c.l.bf16 %v1005
    %v1262 = vunpack.c.l.bf16 %v1006
    %v1263 = vunpack.c.l.bf16 %v1007
    %v1264 = vunpack.c.l.bf16 %v1008
    %v1265 = vunpack.c.l.bf16 %v1009
    %v1266 = vunpack.c.l.bf16 %v1010
    %v1267 = vunpack.c.l.bf16 %v1011
    %v1268 = vunpack.c.l.bf16 %v1012
    %v1269 = vunpack.c.l.bf16 %v1013
    %v1270 = vunpack.c.l.bf16 %v1014
    %v1271 = vunpack.c.l.bf16 %v1015
    %v1272 = vunpack.c.l.bf16 %v1016
    %v1273 = vunpack.c.l.bf16 %v1017
    %v1274 = vunpack.c.l.bf16 %v1018
    %v1275 = vunpack.c.l.bf16 %v1019
    %v1276 = vunpack.c.l.bf16 %v1020
    %v1277 = vunpack.c.l.bf16 %v1021
    %v1278 = vunpack.c.l.bf16 %v1022
    %v1279 = vunpack.c.l.bf16 %v1023
    %v1280 = vunpack.c.l.bf16 %v1024
    %v1281 = vunpack.c.l.bf16 %v1025
    %v1282 = vunpack.c.l.bf16 %v1026
    %v1283 = vunpack.c.l.bf16 %v1027
    %v1284 = vunpack.c.l.bf16 %v1028
    %v1285 = vunpack.c.l.bf16 %v1029
    %v1286 = vunpack.c.l.bf16 %v1030
    %v1287 = vunpack.c.l.bf16 %v1031
    %v1288 = vunpack.c.l.bf16 %v1032
    %v1289 = vunpack.c.l.bf16 %v1033
    %v1290 = vunpack.c.l.bf16 %v1034
    %v1291 = vunpack.c.l.bf16 %v1035
    %v1292 = vunpack.c.l.bf16 %v1036
    %v1293 = vunpack.c.l.bf16 %v1037
    %v1294 = vunpack.c.l.bf16 %v1038
    %v1295 = vunpack.c.l.bf16 %v1039
    %v1296 = vunpack.c.l.bf16 %v1040
    %v1297 = vunpack.c.l.bf16 %v1041
    %v1298 = vunpack.c.l.bf16 %v1042
    %v1299 = vunpack.c.l.bf16 %v1043
    %v1300 = vunpack.c.l.bf16 %v1044
    %v1301 = vunpack.c.l.bf16 %v1045
    %v1302 = vunpack.c.l.bf16 %v1046
    %v1303 = vunpack.c.l.bf16 %v1047
    %v1304 = vunpack.c.l.bf16 %v1048
    %v1305 = vunpack.c.l.bf16 %v1049
    %v1306 = vunpack.c.l.bf16 %v1050
    %v1307 = vunpack.c.l.bf16 %v1051
    %v1308 = vunpack.c.l.bf16 %v1052
    %v1309 = vunpack.c.l.bf16 %v1053
    %v1310 = vunpack.c.l.bf16 %v1054
    %v1311 = vunpack.c.l.bf16 %v1055
    %v1312 = vunpack.c.l.bf16 %v1056
    %v1313 = vunpack.c.l.bf16 %v1057
    %v1314 = vunpack.c.l.bf16 %v1058
    %v1315 = vunpack.c.l.bf16 %v1059
    %v1316 = vunpack.c.l.bf16 %v1060
    %v1317 = vunpack.c.l.bf16 %v1061
    %v1318 = vunpack.c.l.bf16 %v1062
    %v1319 = vunpack.c.l.bf16 %v1063
    %v1320 = vunpack.c.l.bf16 %v1064
    %v1321 = vunpack.c.l.bf16 %v1065
    %v1322 = vunpack.c.l.bf16 %v1066
    %v1323 = vunpack.c.l.bf16 %v1067
    %v1324 = vunpack.c.l.bf16 %v1068
    %v1325 = vunpack.c.l.bf16 %v1069
    %v1326 = vunpack.c.l.bf16 %v1070
    %v1327 = vunpack.c.l.bf16 %v1071
    %v1328 = vunpack.c.l.bf16 %v1072
    %v1329 = vunpack.c.l.bf16 %v1073
    %v1330 = vunpack.c.l.bf16 %v1074
    %v1331 = vunpack.c.l.bf16 %v1075
    %v1332 = vunpack.c.l.bf16 %v1076
    %v1333 = vunpack.c.l.bf16 %v1077
    %v1334 = vmax.f32 %v1078, 0.0
    %v1335 = vmax.f32 %v1079, 0.0
    %v1336 = vmax.f32 %v1080, 0.0
    %v1337 = vmax.f32 %v1081, 0.0
    %v1338 = vmax.f32 %v1082, 0.0
    %v1339 = vmax.f32 %v1083, 0.0
    %v1340 = vmax.f32 %v1084, 0.0
    %v1341 = vmax.f32 %v1085, 0.0
    %v1342 = vmax.f32 %v1086, 0.0
    %v1343 = vmax.f32 %v1087, 0.0
    %v1344 = vmax.f32 %v1088, 0.0
    %v1345 = vmax.f32 %v1089, 0.0
    %v1346 = vmax.f32 %v1090, 0.0
    %v1347 = vmax.f32 %v1091, 0.0
    %v1348 = vmax.f32 %v1092, 0.0
    %v1349 = vmax.f32 %v1093, 0.0
    %v1350 = vmax.f32 %v1094, 0.0
    %v1351 = vmax.f32 %v1095, 0.0
    %v1352 = vmax.f32 %v1096, 0.0
    %v1353 = vmax.f32 %v1097, 0.0
    %v1354 = vmax.f32 %v1098, 0.0
    %v1355 = vmax.f32 %v1099, 0.0
    %v1356 = vmax.f32 %v1100, 0.0
    %v1357 = vmax.f32 %v1101, 0.0
    %v1358 = vmax.f32 %v1102, 0.0
    %v1359 = vmax.f32 %v1103, 0.0
    %v1360 = vmax.f32 %v1104, 0.0
    %v1361 = vmax.f32 %v1105, 0.0
    %v1362 = vmax.f32 %v1106, 0.0
    %v1363 = vmax.f32 %v1107, 0.0
    %v1364 = vmax.f32 %v1108, 0.0
    %v1365 = vmax.f32 %v1109, 0.0
    %v1366 = vmax.f32 %v1110, 0.0
    %v1367 = vmax.f32 %v1111, 0.0
    %v1368 = vmax.f32 %v1112, 0.0
    %v1369 = vmax.f32 %v1113, 0.0
    %v1370 = vmax.f32 %v1114, 0.0
    %v1371 = vmax.f32 %v1115, 0.0
    %v1372 = vmax.f32 %v1116, 0.0
    %v1373 = vmax.f32 %v1117, 0.0
    %v1374 = vmax.f32 %v1118, 0.0
    %v1375 = vmax.f32 %v1119, 0.0
    %v1376 = vmax.f32 %v1120, 0.0
    %v1377 = vmax.f32 %v1121, 0.0
    %v1378 = vmax.f32 %v1122, 0.0
    %v1379 = vmax.f32 %v1123, 0.0
    %v1380 = vmax.f32 %v1124, 0.0
    %v1381 = vmax.f32 %v1125, 0.0
    %v1382 = vmax.f32 %v1126, 0.0
    %v1383 = vmax.f32 %v1127, 0.0
    %v1384 = vmax.f32 %v1128, 0.0
    %v1385 = vmax.f32 %v1129, 0.0
    %v1386 = vmax.f32 %v1130, 0.0
    %v1387 = vmax.f32 %v1131, 0.0
    %v1388 = vmax.f32 %v1132, 0.0
    %v1389 = vmax.f32 %v1133, 0.0
    %v1390 = vmax.f32 %v1134, 0.0
    %v1391 = vmax.f32 %v1135, 0.0
    %v1392 = vmax.f32 %v1136, 0.0
    %v1393 = vmax.f32 %v1137, 0.0
    %v1394 = vmax.f32 %v1138, 0.0
    %v1395 = vmax.f32 %v1139, 0.0
    %v1396 = vmax.f32 %v1140, 0.0
    %v1397 = vmax.f32 %v1141, 0.0
    %v1398 = vmax.f32 %v1142, 0.0
    %v1399 = vmax.f32 %v1143, 0.0
    %v1400 = vmax.f32 %v1144, 0.0
    %v1401 = vmax.f32 %v1145, 0.0
    %v1402 = vmax.f32 %v1146, 0.0
    %v1403 = vmax.f32 %v1147, 0.0
    %v1404 = vmax.f32 %v1148, 0.0
    %v1405 = vmax.f32 %v1149, 0.0
    %v1406 = vmax.f32 %v1150, 0.0
    %v1407 = vmax.f32 %v1151, 0.0
    %v1408 = vmax.f32 %v1152, 0.0
    %v1409 = vmax.f32 %v1153, 0.0
    %v1410 = vmax.f32 %v1154, 0.0
    %v1411 = vmax.f32 %v1155, 0.0
    %v1412 = vmax.f32 %v1156, 0.0
    %v1413 = vmax.f32 %v1157, 0.0
    %v1414 = vmax.f32 %v1158, 0.0
    %v1415 = vmax.f32 %v1159, 0.0
    %v1416 = vmax.f32 %v1160, 0.0
    %v1417 = vmax.f32 %v1161, 0.0
    %v1418 = vmax.f32 %v1162, 0.0
    %v1419 = vmax.f32 %v1163, 0.0
    %v1420 = vmax.f32 %v1164, 0.0
    %v1421 = vmax.f32 %v1165, 0.0
    %v1422 = vmax.f32 %v1166, 0.0
    %v1423 = vmax.f32 %v1167, 0.0
    %v1424 = vmax.f32 %v1168, 0.0
    %v1425 = vmax.f32 %v1169, 0.0
    %v1426 = vmax.f32 %v1170, 0.0
    %v1427 = vmax.f32 %v1171, 0.0
    %v1428 = vmax.f32 %v1172, 0.0
    %v1429 = vmax.f32 %v1173, 0.0
    %v1430 = vmax.f32 %v1174, 0.0
    %v1431 = vmax.f32 %v1175, 0.0
    %v1432 = vmax.f32 %v1176, 0.0
    %v1433 = vmax.f32 %v1177, 0.0
    %v1434 = vmax.f32 %v1178, 0.0
    %v1435 = vmax.f32 %v1179, 0.0
    %v1436 = vmax.f32 %v1180, 0.0
    %v1437 = vmax.f32 %v1181, 0.0
    %v1438 = vmax.f32 %v1182, 0.0
    %v1439 = vmax.f32 %v1183, 0.0
    %v1440 = vmax.f32 %v1184, 0.0
    %v1441 = vmax.f32 %v1185, 0.0
    %v1442 = vmax.f32 %v1186, 0.0
    %v1443 = vmax.f32 %v1187, 0.0
    %v1444 = vmax.f32 %v1188, 0.0
    %v1445 = vmax.f32 %v1189, 0.0
    %v1446 = vmax.f32 %v1190, 0.0
    %v1447 = vmax.f32 %v1191, 0.0
    %v1448 = vmax.f32 %v1192, 0.0
    %v1449 = vmax.f32 %v1193, 0.0
    %v1450 = vmax.f32 %v1194, 0.0
    %v1451 = vmax.f32 %v1195, 0.0
    %v1452 = vmax.f32 %v1196, 0.0
    %v1453 = vmax.f32 %v1197, 0.0
    %v1454 = vmax.f32 %v1198, 0.0
    %v1455 = vmax.f32 %v1199, 0.0
    %v1456 = vmax.f32 %v1200, 0.0
    %v1457 = vmax.f32 %v1201, 0.0
    %v1458 = vmax.f32 %v1202, 0.0
    %v1459 = vmax.f32 %v1203, 0.0
    %v1460 = vmax.f32 %v1204, 0.0
    %v1461 = vmax.f32 %v1205, 0.0
    %v1462 = vmax.f32 %v1206, 0.0
    %v1463 = vmax.f32 %v1207, 0.0
    %v1464 = vmax.f32 %v1208, 0.0
    %v1465 = vmax.f32 %v1209, 0.0
    %v1466 = vmax.f32 %v1210, 0.0
    %v1467 = vmax.f32 %v1211, 0.0
    %v1468 = vmax.f32 %v1212, 0.0
    %v1469 = vmax.f32 %v1213, 0.0
    %v1470 = vmax.f32 %v1214, 0.0
    %v1471 = vmax.f32 %v1215, 0.0
    %v1472 = vmax.f32 %v1216, 0.0
    %v1473 = vmax.f32 %v1217, 0.0
    %v1474 = vmax.f32 %v1218, 0.0
    %v1475 = vmax.f32 %v1219, 0.0
    %v1476 = vmax.f32 %v1220, 0.0
    %v1477 = vmax.f32 %v1221, 0.0
    %v1478 = vmax.f32 %v1222, 0.0
    %v1479 = vmax.f32 %v1223, 0.0
    %v1480 = vmax.f32 %v1224, 0.0
    %v1481 = vmax.f32 %v1225, 0.0
    %v1482 = vmax.f32 %v1226, 0.0
    %v1483 = vmax.f32 %v1227, 0.0
    %v1484 = vmax.f32 %v1228, 0.0
    %v1485 = vmax.f32 %v1229, 0.0
    %v1486 = vmax.f32 %v1230, 0.0
    %v1487 = vmax.f32 %v1231, 0.0
    %v1488 = vmax.f32 %v1232, 0.0
    %v1489 = vmax.f32 %v1233, 0.0
    %v1490 = vmax.f32 %v1234, 0.0
    %v1491 = vmax.f32 %v1235, 0.0
    %v1492 = vmax.f32 %v1236, 0.0
    %v1493 = vmax.f32 %v1237, 0.0
    %v1494 = vmax.f32 %v1238, 0.0
    %v1495 = vmax.f32 %v1239, 0.0
    %v1496 = vmax.f32 %v1240, 0.0
    %v1497 = vmax.f32 %v1241, 0.0
    %v1498 = vmax.f32 %v1242, 0.0
    %v1499 = vmax.f32 %v1243, 0.0
    %v1500 = vmax.f32 %v1244, 0.0
    %v1501 = vmax.f32 %v1245, 0.0
    %v1502 = vmax.f32 %v1246, 0.0
    %v1503 = vmax.f32 %v1247, 0.0
    %v1504 = vmax.f32 %v1248, 0.0
    %v1505 = vmax.f32 %v1249, 0.0
    %v1506 = vmax.f32 %v1250, 0.0
    %v1507 = vmax.f32 %v1251, 0.0
    %v1508 = vmax.f32 %v1252, 0.0
    %v1509 = vmax.f32 %v1253, 0.0
    %v1510 = vmax.f32 %v1254, 0.0
    %v1511 = vmax.f32 %v1255, 0.0
    %v1512 = vmax.f32 %v1256, 0.0
    %v1513 = vmax.f32 %v1257, 0.0
    %v1514 = vmax.f32 %v1258, 0.0
    %v1515 = vmax.f32 %v1259, 0.0
    %v1516 = vmax.f32 %v1260, 0.0
    %v1517 = vmax.f32 %v1261, 0.0
    %v1518 = vmax.f32 %v1262, 0.0
    %v1519 = vmax.f32 %v1263, 0.0
    %v1520 = vmax.f32 %v1264, 0.0
    %v1521 = vmax.f32 %v1265, 0.0
    %v1522 = vmax.f32 %v1266, 0.0
    %v1523 = vmax.f32 %v1267, 0.0
    %v1524 = vmax.f32 %v1268, 0.0
    %v1525 = vmax.f32 %v1269, 0.0
    %v1526 = vmax.f32 %v1270, 0.0
    %v1527 = vmax.f32 %v1271, 0.0
    %v1528 = vmax.f32 %v1272, 0.0
    %v1529 = vmax.f32 %v1273, 0.0
    %v1530 = vmax.f32 %v1274, 0.0
    %v1531 = vmax.f32 %v1275, 0.0
    %v1532 = vmax.f32 %v1276, 0.0
    %v1533 = vmax.f32 %v1277, 0.0
    %v1534 = vmax.f32 %v1278, 0.0
    %v1535 = vmax.f32 %v1279, 0.0
    %v1536 = vmax.f32 %v1280, 0.0
    %v1537 = vmax.f32 %v1281, 0.0
    %v1538 = vmax.f32 %v1282, 0.0
    %v1539 = vmax.f32 %v1283, 0.0
    %v1540 = vmax.f32 %v1284, 0.0
    %v1541 = vmax.f32 %v1285, 0.0
    %v1542 = vmax.f32 %v1286, 0.0
    %v1543 = vmax.f32 %v1287, 0.0
    %v1544 = vmax.f32 %v1288, 0.0
    %v1545 = vmax.f32 %v1289, 0.0
    %v1546 = vmax.f32 %v1290, 0.0
    %v1547 = vmax.f32 %v1291, 0.0
    %v1548 = vmax.f32 %v1292, 0.0
    %v1549 = vmax.f32 %v1293, 0.0
    %v1550 = vmax.f32 %v1294, 0.0
    %v1551 = vmax.f32 %v1295, 0.0
    %v1552 = vmax.f32 %v1296, 0.0
    %v1553 = vmax.f32 %v1297, 0.0
    %v1554 = vmax.f32 %v1298, 0.0
    %v1555 = vmax.f32 %v1299, 0.0
    %v1556 = vmax.f32 %v1300, 0.0
    %v1557 = vmax.f32 %v1301, 0.0
    %v1558 = vmax.f32 %v1302, 0.0
    %v1559 = vmax.f32 %v1303, 0.0
    %v1560 = vmax.f32 %v1304, 0.0
    %v1561 = vmax.f32 %v1305, 0.0
    %v1562 = vmax.f32 %v1306, 0.0
    %v1563 = vmax.f32 %v1307, 0.0
    %v1564 = vmax.f32 %v1308, 0.0
    %v1565 = vmax.f32 %v1309, 0.0
    %v1566 = vmax.f32 %v1310, 0.0
    %v1567 = vmax.f32 %v1311, 0.0
    %v1568 = vmax.f32 %v1312, 0.0
    %v1569 = vmax.f32 %v1313, 0.0
    %v1570 = vmax.f32 %v1314, 0.0
    %v1571 = vmax.f32 %v1315, 0.0
    %v1572 = vmax.f32 %v1316, 0.0
    %v1573 = vmax.f32 %v1317, 0.0
    %v1574 = vmax.f32 %v1318, 0.0
    %v1575 = vmax.f32 %v1319, 0.0
    %v1576 = vmax.f32 %v1320, 0.0
    %v1577 = vmax.f32 %v1321, 0.0
    %v1578 = vmax.f32 %v1322, 0.0
    %v1579 = vmax.f32 %v1323, 0.0
    %v1580 = vmax.f32 %v1324, 0.0
    %v1581 = vmax.f32 %v1325, 0.0
    %v1582 = vmax.f32 %v1326, 0.0
    %v1583 = vmax.f32 %v1327, 0.0
    %v1584 = vmax.f32 %v1328, 0.0
    %v1585 = vmax.f32 %v1329, 0.0
    %v1586 = vmax.f32 %v1330, 0.0
    %v1587 = vmax.f32 %v1331, 0.0
    %v1588 = vmax.f32 %v1332, 0.0
    %v1589 = vmax.f32 %v1333, 0.0
    %v1590 = vpack.c.bf16 %v1334, %v1334
    %v1591 = vpack.c.bf16 %v1335, %v1335
    %v1592 = vpack.c.bf16 %v1336, %v1336
    %v1593 = vpack.c.bf16 %v1337, %v1337
    %v1594 = vpack.c.bf16 %v1338, %v1338
    %v1595 = vpack.c.bf16 %v1339, %v1339
    %v1596 = vpack.c.bf16 %v1340, %v1340
    %v1597 = vpack.c.bf16 %v1341, %v1341
    %v1598 = vpack.c.bf16 %v1342, %v1342
    %v1599 = vpack.c.bf16 %v1343, %v1343
    %v1600 = vpack.c.bf16 %v1344, %v1344
    %v1601 = vpack.c.bf16 %v1345, %v1345
    %v1602 = vpack.c.bf16 %v1346, %v1346
    %v1603 = vpack.c.bf16 %v1347, %v1347
    %v1604 = vpack.c.bf16 %v1348, %v1348
    %v1605 = vpack.c.bf16 %v1349, %v1349
    %v1606 = vpack.c.bf16 %v1350, %v1350
    %v1607 = vpack.c.bf16 %v1351, %v1351
    %v1608 = vpack.c.bf16 %v1352, %v1352
    %v1609 = vpack.c.bf16 %v1353, %v1353
    %v1610 = vpack.c.bf16 %v1354, %v1354
    %v1611 = vpack.c.bf16 %v1355, %v1355
    %v1612 = vpack.c.bf16 %v1356, %v1356
    %v1613 = vpack.c.bf16 %v1357, %v1357
    %v1614 = vpack.c.bf16 %v1358, %v1358
    %v1615 = vpack.c.bf16 %v1359, %v1359
    %v1616 = vpack.c.bf16 %v1360, %v1360
    %v1617 = vpack.c.bf16 %v1361, %v1361
    %v1618 = vpack.c.bf16 %v1362, %v1362
    %v1619 = vpack.c.bf16 %v1363, %v1363
    %v1620 = vpack.c.bf16 %v1364, %v1364
    %v1621 = vpack.c.bf16 %v1365, %v1365
    %v1622 = vpack.c.bf16 %v1366, %v1366
    %v1623 = vpack.c.bf16 %v1367, %v1367
    %v1624 = vpack.c.bf16 %v1368, %v1368
    %v1625 = vpack.c.bf16 %v1369, %v1369
    %v1626 = vpack.c.bf16 %v1370, %v1370
    %v1627 = vpack.c.bf16 %v1371, %v1371
    %v1628 = vpack.c.bf16 %v1372, %v1372
    %v1629 = vpack.c.bf16 %v1373, %v1373
    %v1630 = vpack.c.bf16 %v1374, %v1374
    %v1631 = vpack.c.bf16 %v1375, %v1375
    %v1632 = vpack.c.bf16 %v1376, %v1376
    %v1633 = vpack.c.bf16 %v1377, %v1377
    %v1634 = vpack.c.bf16 %v1378, %v1378
    %v1635 = vpack.c.bf16 %v1379, %v1379
    %v1636 = vpack.c.bf16 %v1380, %v1380
    %v1637 = vpack.c.bf16 %v1381, %v1381
    %v1638 = vpack.c.bf16 %v1382, %v1382
    %v1639 = vpack.c.bf16 %v1383, %v1383
    %v1640 = vpack.c.bf16 %v1384, %v1384
    %v1641 = vpack.c.bf16 %v1385, %v1385
    %v1642 = vpack.c.bf16 %v1386, %v1386
    %v1643 = vpack.c.bf16 %v1387, %v1387
    %v1644 = vpack.c.bf16 %v1388, %v1388
    %v1645 = vpack.c.bf16 %v1389, %v1389
    %v1646 = vpack.c.bf16 %v1390, %v1390
    %v1647 = vpack.c.bf16 %v1391, %v1391
    %v1648 = vpack.c.bf16 %v1392, %v1392
    %v1649 = vpack.c.bf16 %v1393, %v1393
    %v1650 = vpack.c.bf16 %v1394, %v1394
    %v1651 = vpack.c.bf16 %v1395, %v1395
    %v1652 = vpack.c.bf16 %v1396, %v1396
    %v1653 = vpack.c.bf16 %v1397, %v1397
    %v1654 = vpack.c.bf16 %v1398, %v1398
    %v1655 = vpack.c.bf16 %v1399, %v1399
    %v1656 = vpack.c.bf16 %v1400, %v1400
    %v1657 = vpack.c.bf16 %v1401, %v1401
    %v1658 = vpack.c.bf16 %v1402, %v1402
    %v1659 = vpack.c.bf16 %v1403, %v1403
    %v1660 = vpack.c.bf16 %v1404, %v1404
    %v1661 = vpack.c.bf16 %v1405, %v1405
    %v1662 = vpack.c.bf16 %v1406, %v1406
    %v1663 = vpack.c.bf16 %v1407, %v1407
    %v1664 = vpack.c.bf16 %v1408, %v1408
    %v1665 = vpack.c.bf16 %v1409, %v1409
    %v1666 = vpack.c.bf16 %v1410, %v1410
    %v1667 = vpack.c.bf16 %v1411, %v1411
    %v1668 = vpack.c.bf16 %v1412, %v1412
    %v1669 = vpack.c.bf16 %v1413, %v1413
    %v1670 = vpack.c.bf16 %v1414, %v1414
    %v1671 = vpack.c.bf16 %v1415, %v1415
    %v1672 = vpack.c.bf16 %v1416, %v1416
    %v1673 = vpack.c.bf16 %v1417, %v1417
    %v1674 = vpack.c.bf16 %v1418, %v1418
    %v1675 = vpack.c.bf16 %v1419, %v1419
    %v1676 = vpack.c.bf16 %v1420, %v1420
    %v1677 = vpack.c.bf16 %v1421, %v1421
    %v1678 = vpack.c.bf16 %v1422, %v1422
    %v1679 = vpack.c.bf16 %v1423, %v1423
    %v1680 = vpack.c.bf16 %v1424, %v1424
    %v1681 = vpack.c.bf16 %v1425, %v1425
    %v1682 = vpack.c.bf16 %v1426, %v1426
    %v1683 = vpack.c.bf16 %v1427, %v1427
    %v1684 = vpack.c.bf16 %v1428, %v1428
    %v1685 = vpack.c.bf16 %v1429, %v1429
    %v1686 = vpack.c.bf16 %v1430, %v1430
    %v1687 = vpack.c.bf16 %v1431, %v1431
    %v1688 = vpack.c.bf16 %v1432, %v1432
    %v1689 = vpack.c.bf16 %v1433, %v1433
    %v1690 = vpack.c.bf16 %v1434, %v1434
    %v1691 = vpack.c.bf16 %v1435, %v1435
    %v1692 = vpack.c.bf16 %v1436, %v1436
    %v1693 = vpack.c.bf16 %v1437, %v1437
    %v1694 = vpack.c.bf16 %v1438, %v1438
    %v1695 = vpack.c.bf16 %v1439, %v1439
    %v1696 = vpack.c.bf16 %v1440, %v1440
    %v1697 = vpack.c.bf16 %v1441, %v1441
    %v1698 = vpack.c.bf16 %v1442, %v1442
    %v1699 = vpack.c.bf16 %v1443, %v1443
    %v1700 = vpack.c.bf16 %v1444, %v1444
    %v1701 = vpack.c.bf16 %v1445, %v1445
    %v1702 = vpack.c.bf16 %v1446, %v1446
    %v1703 = vpack.c.bf16 %v1447, %v1447
    %v1704 = vpack.c.bf16 %v1448, %v1448
    %v1705 = vpack.c.bf16 %v1449, %v1449
    %v1706 = vpack.c.bf16 %v1450, %v1450
    %v1707 = vpack.c.bf16 %v1451, %v1451
    %v1708 = vpack.c.bf16 %v1452, %v1452
    %v1709 = vpack.c.bf16 %v1453, %v1453
    %v1710 = vpack.c.bf16 %v1454, %v1454
    %v1711 = vpack.c.bf16 %v1455, %v1455
    %v1712 = vpack.c.bf16 %v1456, %v1456
    %v1713 = vpack.c.bf16 %v1457, %v1457
    %v1714 = vpack.c.bf16 %v1458, %v1458
    %v1715 = vpack.c.bf16 %v1459, %v1459
    %v1716 = vpack.c.bf16 %v1460, %v1460
    %v1717 = vpack.c.bf16 %v1461, %v1461
    %v1718 = vpack.c.bf16 %v1462, %v1462
    %v1719 = vpack.c.bf16 %v1463, %v1463
    %v1720 = vpack.c.bf16 %v1464, %v1464
    %v1721 = vpack.c.bf16 %v1465, %v1465
    %v1722 = vpack.c.bf16 %v1466, %v1466
    %v1723 = vpack.c.bf16 %v1467, %v1467
    %v1724 = vpack.c.bf16 %v1468, %v1468
    %v1725 = vpack.c.bf16 %v1469, %v1469
    %v1726 = vpack.c.bf16 %v1470, %v1470
    %v1727 = vpack.c.bf16 %v1471, %v1471
    %v1728 = vpack.c.bf16 %v1472, %v1472
    %v1729 = vpack.c.bf16 %v1473, %v1473
    %v1730 = vpack.c.bf16 %v1474, %v1474
    %v1731 = vpack.c.bf16 %v1475, %v1475
    %v1732 = vpack.c.bf16 %v1476, %v1476
    %v1733 = vpack.c.bf16 %v1477, %v1477
    %v1734 = vpack.c.bf16 %v1478, %v1478
    %v1735 = vpack.c.bf16 %v1479, %v1479
    %v1736 = vpack.c.bf16 %v1480, %v1480
    %v1737 = vpack.c.bf16 %v1481, %v1481
    %v1738 = vpack.c.bf16 %v1482, %v1482
    %v1739 = vpack.c.bf16 %v1483, %v1483
    %v1740 = vpack.c.bf16 %v1484, %v1484
    %v1741 = vpack.c.bf16 %v1485, %v1485
    %v1742 = vpack.c.bf16 %v1486, %v1486
    %v1743 = vpack.c.bf16 %v1487, %v1487
    %v1744 = vpack.c.bf16 %v1488, %v1488
    %v1745 = vpack.c.bf16 %v1489, %v1489
    %v1746 = vpack.c.bf16 %v1490, %v1490
    %v1747 = vpack.c.bf16 %v1491, %v1491
    %v1748 = vpack.c.bf16 %v1492, %v1492
    %v1749 = vpack.c.bf16 %v1493, %v1493
    %v1750 = vpack.c.bf16 %v1494, %v1494
    %v1751 = vpack.c.bf16 %v1495, %v1495
    %v1752 = vpack.c.bf16 %v1496, %v1496
    %v1753 = vpack.c.bf16 %v1497, %v1497
    %v1754 = vpack.c.bf16 %v1498, %v1498
    %v1755 = vpack.c.bf16 %v1499, %v1499
    %v1756 = vpack.c.bf16 %v1500, %v1500
    %v1757 = vpack.c.bf16 %v1501, %v1501
    %v1758 = vpack.c.bf16 %v1502, %v1502
    %v1759 = vpack.c.bf16 %v1503, %v1503
    %v1760 = vpack.c.bf16 %v1504, %v1504
    %v1761 = vpack.c.bf16 %v1505, %v1505
    %v1762 = vpack.c.bf16 %v1506, %v1506
    %v1763 = vpack.c.bf16 %v1507, %v1507
    %v1764 = vpack.c.bf16 %v1508, %v1508
    %v1765 = vpack.c.bf16 %v1509, %v1509
    %v1766 = vpack.c.bf16 %v1510, %v1510
    %v1767 = vpack.c.bf16 %v1511, %v1511
    %v1768 = vpack.c.bf16 %v1512, %v1512
    %v1769 = vpack.c.bf16 %v1513, %v1513
    %v1770 = vpack.c.bf16 %v1514, %v1514
    %v1771 = vpack.c.bf16 %v1515, %v1515
    %v1772 = vpack.c.bf16 %v1516, %v1516
    %v1773 = vpack.c.bf16 %v1517, %v1517
    %v1774 = vpack.c.bf16 %v1518, %v1518
    %v1775 = vpack.c.bf16 %v1519, %v1519
    %v1776 = vpack.c.bf16 %v1520, %v1520
    %v1777 = vpack.c.bf16 %v1521, %v1521
    %v1778 = vpack.c.bf16 %v1522, %v1522
    %v1779 = vpack.c.bf16 %v1523, %v1523
    %v1780 = vpack.c.bf16 %v1524, %v1524
    %v1781 = vpack.c.bf16 %v1525, %v1525
    %v1782 = vpack.c.bf16 %v1526, %v1526
    %v1783 = vpack.c.bf16 %v1527, %v1527
    %v1784 = vpack.c.bf16 %v1528, %v1528
    %v1785 = vpack.c.bf16 %v1529, %v1529
    %v1786 = vpack.c.bf16 %v1530, %v1530
    %v1787 = vpack.c.bf16 %v1531, %v1531
    %v1788 = vpack.c.bf16 %v1532, %v1532
    %v1789 = vpack.c.bf16 %v1533, %v1533
    %v1790 = vpack.c.bf16 %v1534, %v1534
    %v1791 = vpack.c.bf16 %v1535, %v1535
    %v1792 = vpack.c.bf16 %v1536, %v1536
    %v1793 = vpack.c.bf16 %v1537, %v1537
    %v1794 = vpack.c.bf16 %v1538, %v1538
    %v1795 = vpack.c.bf16 %v1539, %v1539
    %v1796 = vpack.c.bf16 %v1540, %v1540
    %v1797 = vpack.c.bf16 %v1541, %v1541
    %v1798 = vpack.c.bf16 %v1542, %v1542
    %v1799 = vpack.c.bf16 %v1543, %v1543
    %v1800 = vpack.c.bf16 %v1544, %v1544
    %v1801 = vpack.c.bf16 %v1545, %v1545
    %v1802 = vpack.c.bf16 %v1546, %v1546
    %v1803 = vpack.c.bf16 %v1547, %v1547
    %v1804 = vpack.c.bf16 %v1548, %v1548
    %v1805 = vpack.c.bf16 %v1549, %v1549
    %v1806 = vpack.c.bf16 %v1550, %v1550
    %v1807 = vpack.c.bf16 %v1551, %v1551
    %v1808 = vpack.c.bf16 %v1552, %v1552
    %v1809 = vpack.c.bf16 %v1553, %v1553
    %v1810 = vpack.c.bf16 %v1554, %v1554
    %v1811 = vpack.c.bf16 %v1555, %v1555
    %v1812 = vpack.c.bf16 %v1556, %v1556
    %v1813 = vpack.c.bf16 %v1557, %v1557
    %v1814 = vpack.c.bf16 %v1558, %v1558
    %v1815 = vpack.c.bf16 %v1559, %v1559
    %v1816 = vpack.c.bf16 %v1560, %v1560
    %v1817 = vpack.c.bf16 %v1561, %v1561
    %v1818 = vpack.c.bf16 %v1562, %v1562
    %v1819 = vpack.c.bf16 %v1563, %v1563
    %v1820 = vpack.c.bf16 %v1564, %v1564
    %v1821 = vpack.c.bf16 %v1565, %v1565
    %v1822 = vpack.c.bf16 %v1566, %v1566
    %v1823 = vpack.c.bf16 %v1567, %v1567
    %v1824 = vpack.c.bf16 %v1568, %v1568
    %v1825 = vpack.c.bf16 %v1569, %v1569
    %v1826 = vpack.c.bf16 %v1570, %v1570
    %v1827 = vpack.c.bf16 %v1571, %v1571
    %v1828 = vpack.c.bf16 %v1572, %v1572
    %v1829 = vpack.c.bf16 %v1573, %v1573
    %v1830 = vpack.c.bf16 %v1574, %v1574
    %v1831 = vpack.c.bf16 %v1575, %v1575
    %v1832 = vpack.c.bf16 %v1576, %v1576
    %v1833 = vpack.c.bf16 %v1577, %v1577
    %v1834 = vpack.c.bf16 %v1578, %v1578
    %v1835 = vpack.c.bf16 %v1579, %v1579
    %v1836 = vpack.c.bf16 %v1580, %v1580
    %v1837 = vpack.c.bf16 %v1581, %v1581
    %v1838 = vpack.c.bf16 %v1582, %v1582
    %v1839 = vpack.c.bf16 %v1583, %v1583
    %v1840 = vpack.c.bf16 %v1584, %v1584
    %v1841 = vpack.c.bf16 %v1585, %v1585
    %v1842 = vpack.c.bf16 %v1586, %v1586
    %v1843 = vpack.c.bf16 %v1587, %v1587
    %v1844 = vpack.c.bf16 %v1588, %v1588
    %v1845 = vpack.c.bf16 %v1589, %v1589
    %v1878 = vunpack.c.l.b16 %v1590
    %v1879 = vunpack.c.l.b16 %v1591
    %v1880 = vunpack.c.l.b16 %v1592
    %v1881 = vunpack.c.l.b16 %v1593
    %v1882 = vunpack.c.l.b16 %v1594
    %v1883 = vunpack.c.l.b16 %v1595
    %v1884 = vunpack.c.l.b16 %v1596
    %v1885 = vunpack.c.l.b16 %v1597
    %v1886 = vunpack.c.l.b16 %v1598
    %v1887 = vunpack.c.l.b16 %v1599
    %v1888 = vunpack.c.l.b16 %v1600
    %v1889 = vunpack.c.l.b16 %v1601
    %v1890 = vunpack.c.l.b16 %v1602
    %v1891 = vunpack.c.l.b16 %v1603
    %v1892 = vunpack.c.l.b16 %v1604
    %v1893 = vunpack.c.l.b16 %v1605
    %v1894 = vunpack.c.l.b16 %v1606
    %v1895 = vunpack.c.l.b16 %v1607
    %v1896 = vunpack.c.l.b16 %v1608
    %v1897 = vunpack.c.l.b16 %v1609
    %v1898 = vunpack.c.l.b16 %v1610
    %v1899 = vunpack.c.l.b16 %v1611
    %v1900 = vunpack.c.l.b16 %v1612
    %v1901 = vunpack.c.l.b16 %v1613
    %v1902 = vunpack.c.l.b16 %v1614
    %v1903 = vunpack.c.l.b16 %v1615
    %v1904 = vunpack.c.l.b16 %v1616
    %v1905 = vunpack.c.l.b16 %v1617
    %v1906 = vunpack.c.l.b16 %v1618
    %v1907 = vunpack.c.l.b16 %v1619
    %v1908 = vunpack.c.l.b16 %v1620
    %v1909 = vunpack.c.l.b16 %v1621
    %v1910 = vpack.c.b16 %v1879, %v1878
    %v1911 = vpack.c.b16 %v1881, %v1880
    %v1912 = vpack.c.b16 %v1883, %v1882
    %v1913 = vpack.c.b16 %v1885, %v1884
    %v1914 = vpack.c.b16 %v1887, %v1886
    %v1915 = vpack.c.b16 %v1889, %v1888
    %v1916 = vpack.c.b16 %v1891, %v1890
    %v1917 = vpack.c.b16 %v1893, %v1892
    %v1918 = vpack.c.b16 %v1895, %v1894
    %v1919 = vpack.c.b16 %v1897, %v1896
    %v1920 = vpack.c.b16 %v1899, %v1898
    %v1921 = vpack.c.b16 %v1901, %v1900
    %v1922 = vpack.c.b16 %v1903, %v1902
    %v1923 = vpack.c.b16 %v1905, %v1904
    %v1924 = vpack.c.b16 %v1907, %v1906
    %v1925 = vpack.c.b16 %v1909, %v1908
    %1942 = vmatpush.bf16.msra.mxu0 %v1917
    %1943 = vmatpush.bf16.msra.mxu0 %v1916
    %1944 = vmatpush.bf16.msra.mxu0 %v1915
    %1945 = vmatpush.bf16.msra.mxu0 %v1914
    %1946 = vmatpush.bf16.msra.mxu0 %v1913
    %1947 = vmatpush.bf16.msra.mxu0 %v1912
    %1948 = vmatpush.bf16.msra.mxu0 %v1911
    %1949 = vmatpush.bf16.msra.mxu0 %v1910
    %1950 = vmatmul.bf16.gmra.mxu0 1065369472
    %v1951 = vpop.f32.mrf.mxu0
    %v1952 = vadd.f32 0.0, %v1951
    %v1953 = vpop.f32.mrf.mxu0
    %1954 = vdwg.mxu0
    %1955 = vmatpush.bf16.msra.mxu0 %v1925
    %1956 = vmatpush.bf16.msra.mxu0 %v1924
    %1957 = vmatpush.bf16.msra.mxu0 %v1923
    %1958 = vmatpush.bf16.msra.mxu0 %v1922
    %1959 = vmatpush.bf16.msra.mxu0 %v1921
    %1960 = vmatpush.bf16.msra.mxu0 %v1920
    %1961 = vmatpush.bf16.msra.mxu0 %v1919
    %1962 = vmatpush.bf16.msra.mxu0 %v1918
    %1963 = vmatmul.bf16.gmra.mxu0 1065369472
    %v1964 = vpop.f32.mrf.mxu0
    %v1965 = vadd.f32 %v1952, %v1964
    %v1966 = vpop.f32.mrf.mxu0
    %1967 = vdwg.mxu0
    %v2000 = vunpack.c.l.b16 %v1622
    %v2001 = vunpack.c.l.b16 %v1623
    %v2002 = vunpack.c.l.b16 %v1624
    %v2003 = vunpack.c.l.b16 %v1625
    %v2004 = vunpack.c.l.b16 %v1626
    %v2005 = vunpack.c.l.b16 %v1627
    %v2006 = vunpack.c.l.b16 %v1628
    %v2007 = vunpack.c.l.b16 %v1629
    %v2008 = vunpack.c.l.b16 %v1630
    %v2009 = vunpack.c.l.b16 %v1631
    %v2010 = vunpack.c.l.b16 %v1632
    %v2011 = vunpack.c.l.b16 %v1633
    %v2012 = vunpack.c.l.b16 %v1634
    %v2013 = vunpack.c.l.b16 %v1635
    %v2014 = vunpack.c.l.b16 %v1636
    %v2015 = vunpack.c.l.b16 %v1637
    %v2016 = vunpack.c.l.b16 %v1638
    %v2017 = vunpack.c.l.b16 %v1639
    %v2018 = vunpack.c.l.b16 %v1640
    %v2019 = vunpack.c.l.b16 %v1641
    %v2020 = vunpack.c.l.b16 %v1642
    %v2021 = vunpack.c.l.b16 %v1643
    %v2022 = vunpack.c.l.b16 %v1644
    %v2023 = vunpack.c.l.b16 %v1645
    %v2024 = vunpack.c.l.b16 %v1646
    %v2025 = vunpack.c.l.b16 %v1647
    %v2026 = vunpack.c.l.b16 %v1648
    %v2027 = vunpack.c.l.b16 %v1649
    %v2028 = vunpack.c.l.b16 %v1650
    %v2029 = vunpack.c.l.b16 %v1651
    %v2030 = vunpack.c.l.b16 %v1652
    %v2031 = vunpack.c.l.b16 %v1653
    %v2032 = vpack.c.b16 %v2001, %v2000
    %v2033 = vpack.c.b16 %v2003, %v2002
    %v2034 = vpack.c.b16 %v2005, %v2004
    %v2035 = vpack.c.b16 %v2007, %v2006
    %v2036 = vpack.c.b16 %v2009, %v2008
    %v2037 = vpack.c.b16 %v2011, %v2010
    %v2038 = vpack.c.b16 %v2013, %v2012
    %v2039 = vpack.c.b16 %v2015, %v2014
    %v2040 = vpack.c.b16 %v2017, %v2016
    %v2041 = vpack.c.b16 %v2019, %v2018
    %v2042 = vpack.c.b16 %v2021, %v2020
    %v2043 = vpack.c.b16 %v2023, %v2022
    %v2044 = vpack.c.b16 %v2025, %v2024
    %v2045 = vpack.c.b16 %v2027, %v2026
    %v2046 = vpack.c.b16 %v2029, %v2028
    %v2047 = vpack.c.b16 %v2031, %v2030
    %2064 = vmatpush.bf16.msra.mxu0 %v2039
    %2065 = vmatpush.bf16.msra.mxu0 %v2038
    %2066 = vmatpush.bf16.msra.mxu0 %v2037
    %2067 = vmatpush.bf16.msra.mxu0 %v2036
    %2068 = vmatpush.bf16.msra.mxu0 %v2035
    %2069 = vmatpush.bf16.msra.mxu0 %v2034
    %2070 = vmatpush.bf16.msra.mxu0 %v2033
    %2071 = vmatpush.bf16.msra.mxu0 %v2032
    %2072 = vmatmul.bf16.gmra.mxu0 1065369472
    %v2073 = vpop.f32.mrf.mxu0
    %v2074 = vadd.f32 0.0, %v2073
    %v2075 = vpop.f32.mrf.mxu0
    %2076 = vdwg.mxu0
    %2077 = vmatpush.bf16.msra.mxu0 %v2047
    %2078 = vmatpush.bf16.msra.mxu0 %v2046
    %2079 = vmatpush.bf16.msra.mxu0 %v2045
    %2080 = vmatpush.bf16.msra.mxu0 %v2044
    %2081 = vmatpush.bf16.msra.mxu0 %v2043
    %2082 = vmatpush.bf16.msra.mxu0 %v2042
    %2083 = vmatpush.bf16.msra.mxu0 %v2041
    %2084 = vmatpush.bf16.msra.mxu0 %v2040
    %2085 = vmatmul.bf16.gmra.mxu0 1065369472
    %v2086 = vpop.f32.mrf.mxu0
    %v2087 = vadd.f32 %v2074, %v2086
    %v2088 = vpop.f32.mrf.mxu0
    %2089 = vdwg.mxu0
    %v2122 = vunpack.c.l.b16 %v1654
    %v2123 = vunpack.c.l.b16 %v1655
    %v2124 = vunpack.c.l.b16 %v1656
    %v2125 = vunpack.c.l.b16 %v1657
    %v2126 = vunpack.c.l.b16 %v1658
    %v2127 = vunpack.c.l.b16 %v1659
    %v2128 = vunpack.c.l.b16 %v1660
    %v2129 = vunpack.c.l.b16 %v1661
    %v2130 = vunpack.c.l.b16 %v1662
    %v2131 = vunpack.c.l.b16 %v1663
    %v2132 = vunpack.c.l.b16 %v1664
    %v2133 = vunpack.c.l.b16 %v1665
    %v2134 = vunpack.c.l.b16 %v1666
    %v2135 = vunpack.c.l.b16 %v1667
    %v2136 = vunpack.c.l.b16 %v1668
    %v2137 = vunpack.c.l.b16 %v1669
    %v2138 = vunpack.c.l.b16 %v1670
    %v2139 = vunpack.c.l.b16 %v1671
    %v2140 = vunpack.c.l.b16 %v1672
    %v2141 = vunpack.c.l.b16 %v1673
    %v2142 = vunpack.c.l.b16 %v1674
    %v2143 = vunpack.c.l.b16 %v1675
    %v2144 = vunpack.c.l.b16 %v1676
    %v2145 = vunpack.c.l.b16 %v1677
    %v2146 = vunpack.c.l.b16 %v1678
    %v2147 = vunpack.c.l.b16 %v1679
    %v2148 = vunpack.c.l.b16 %v1680
    %v2149 = vunpack.c.l.b16 %v1681
    %v2150 = vunpack.c.l.b16 %v1682
    %v2151 = vunpack.c.l.b16 %v1683
    %v2152 = vunpack.c.l.b16 %v1684
    %v2153 = vunpack.c.l.b16 %v1685
    %v2154 = vpack.c.b16 %v2123, %v2122
    %v2155 = vpack.c.b16 %v2125, %v2124
    %v2156 = vpack.c.b16 %v2127, %v2126
    %v2157 = vpack.c.b16 %v2129, %v2128
    %v2158 = vpack.c.b16 %v2131, %v2130
    %v2159 = vpack.c.b16 %v2133, %v2132
    %v2160 = vpack.c.b16 %v2135, %v2134
    %v2161 = vpack.c.b16 %v2137, %v2136
    %v2162 = vpack.c.b16 %v2139, %v2138
    %v2163 = vpack.c.b16 %v2141, %v2140
    %v2164 = vpack.c.b16 %v2143, %v2142
    %v2165 = vpack.c.b16 %v2145, %v2144
    %v2166 = vpack.c.b16 %v2147, %v2146
    %v2167 = vpack.c.b16 %v2149, %v2148
    %v2168 = vpack.c.b16 %v2151, %v2150
    %v2169 = vpack.c.b16 %v2153, %v2152
    %2186 = vmatpush.bf16.msra.mxu0 %v2161
    %2187 = vmatpush.bf16.msra.mxu0 %v2160
    %2188 = vmatpush.bf16.msra.mxu0 %v2159
    %2189 = vmatpush.bf16.msra.mxu0 %v2158
    %2190 = vmatpush.bf16.msra.mxu0 %v2157
    %2191 = vmatpush.bf16.msra.mxu0 %v2156
    %2192 = vmatpush.bf16.msra.mxu0 %v2155
    %2193 = vmatpush.bf16.msra.mxu0 %v2154
    %2194 = vmatmul.bf16.gmra.mxu0 1065369472
    %v2195 = vpop.f32.mrf.mxu0
    %v2196 = vadd.f32 0.0, %v2195
    %v2197 = vpop.f32.mrf.mxu0
    %2198 = vdwg.mxu0
    %2199 = vmatpush.bf16.msra.mxu0 %v2169
    %2200 = vmatpush.bf16.msra.mxu0 %v2168
    %2201 = vmatpush.bf16.msra.mxu0 %v2167
    %2202 = vmatpush.bf16.msra.mxu0 %v2166
    %2203 = vmatpush.bf16.msra.mxu0 %v2165
    %2204 = vmatpush.bf16.msra.mxu0 %v2164
    %2205 = vmatpush.bf16.msra.mxu0 %v2163
    %2206 = vmatpush.bf16.msra.mxu0 %v2162
    %2207 = vmatmul.bf16.gmra.mxu0 1065369472
    %v2208 = vpop.f32.mrf.mxu0
    %v2209 = vadd.f32 %v2196, %v2208
    %v2210 = vpop.f32.mrf.mxu0
    %2211 = vdwg.mxu0
    %v2244 = vunpack.c.l.b16 %v1686
    %v2245 = vunpack.c.l.b16 %v1687
    %v2246 = vunpack.c.l.b16 %v1688
    %v2247 = vunpack.c.l.b16 %v1689
    %v2248 = vunpack.c.l.b16 %v1690
    %v2249 = vunpack.c.l.b16 %v1691
    %v2250 = vunpack.c.l.b16 %v1692
    %v2251 = vunpack.c.l.b16 %v1693
    %v2252 = vunpack.c.l.b16 %v1694
    %v2253 = vunpack.c.l.b16 %v1695
    %v2254 = vunpack.c.l.b16 %v1696
    %v2255 = vunpack.c.l.b16 %v1697
    %v2256 = vunpack.c.l.b16 %v1698
    %v2257 = vunpack.c.l.b16 %v1699
    %v2258 = vunpack.c.l.b16 %v1700
    %v2259 = vunpack.c.l.b16 %v1701
    %v2260 = vunpack.c.l.b16 %v1702
    %v2261 = vunpack.c.l.b16 %v1703
    %v2262 = vunpack.c.l.b16 %v1704
    %v2263 = vunpack.c.l.b16 %v1705
    %v2264 = vunpack.c.l.b16 %v1706
    %v2265 = vunpack.c.l.b16 %v1707
    %v2266 = vunpack.c.l.b16 %v1708
    %v2267 = vunpack.c.l.b16 %v1709
    %v2268 = vunpack.c.l.b16 %v1710
    %v2269 = vunpack.c.l.b16 %v1711
    %v2270 = vunpack.c.l.b16 %v1712
    %v2271 = vunpack.c.l.b16 %v1713
    %v2272 = vunpack.c.l.b16 %v1714
    %v2273 = vunpack.c.l.b16 %v1715
    %v2274 = vunpack.c.l.b16 %v1716
    %v2275 = vunpack.c.l.b16 %v1717
    %v2276 = vpack.c.b16 %v2245, %v2244
    %v2277 = vpack.c.b16 %v2247, %v2246
    %v2278 = vpack.c.b16 %v2249, %v2248
    %v2279 = vpack.c.b16 %v2251, %v2250
    %v2280 = vpack.c.b16 %v2253, %v2252
    %v2281 = vpack.c.b16 %v2255, %v2254
    %v2282 = vpack.c.b16 %v2257, %v2256
    %v2283 = vpack.c.b16 %v2259, %v2258
    %v2284 = vpack.c.b16 %v2261, %v2260
    %v2285 = vpack.c.b16 %v2263, %v2262
    %v2286 = vpack.c.b16 %v2265, %v2264
    %v2287 = vpack.c.b16 %v2267, %v2266
    %v2288 = vpack.c.b16 %v2269, %v2268
    %v2289 = vpack.c.b16 %v2271, %v2270
    %v2290 = vpack.c.b16 %v2273, %v2272
    %v2291 = vpack.c.b16 %v2275, %v2274
    %2308 = vmatpush.bf16.msra.mxu0 %v2283
    %2309 = vmatpush.bf16.msra.mxu0 %v2282
    %2310 = vmatpush.bf16.msra.mxu0 %v2281
    %2311 = vmatpush.bf16.msra.mxu0 %v2280
    %2312 = vmatpush.bf16.msra.mxu0 %v2279
    %2313 = vmatpush.bf16.msra.mxu0 %v2278
    %2314 = vmatpush.bf16.msra.mxu0 %v2277
    %2315 = vmatpush.bf16.msra.mxu0 %v2276
    %2316 = vmatmul.bf16.gmra.mxu0 1065369472
    %v2317 = vpop.f32.mrf.mxu0
    %v2318 = vadd.f32 0.0, %v2317
    %v2319 = vpop.f32.mrf.mxu0
    %2320 = vdwg.mxu0
    %2321 = vmatpush.bf16.msra.mxu0 %v2291
    %2322 = vmatpush.bf16.msra.mxu0 %v2290
    %2323 = vmatpush.bf16.msra.mxu0 %v2289
    %2324 = vmatpush.bf16.msra.mxu0 %v2288
    %2325 = vmatpush.bf16.msra.mxu0 %v2287
    %2326 = vmatpush.bf16.msra.mxu0 %v2286
    %2327 = vmatpush.bf16.msra.mxu0 %v2285
    %2328 = vmatpush.bf16.msra.mxu0 %v2284
    %2329 = vmatmul.bf16.gmra.mxu0 1065369472
    %v2330 = vpop.f32.mrf.mxu0
    %v2331 = vadd.f32 %v2318, %v2330
    %v2332 = vpop.f32.mrf.mxu0
    %2333 = vdwg.mxu0
    %v2366 = vunpack.c.l.b16 %v1718
    %v2367 = vunpack.c.l.b16 %v1719
    %v2368 = vunpack.c.l.b16 %v1720
    %v2369 = vunpack.c.l.b16 %v1721
    %v2370 = vunpack.c.l.b16 %v1722
    %v2371 = vunpack.c.l.b16 %v1723
    %v2372 = vunpack.c.l.b16 %v1724
    %v2373 = vunpack.c.l.b16 %v1725
    %v2374 = vunpack.c.l.b16 %v1726
    %v2375 = vunpack.c.l.b16 %v1727
    %v2376 = vunpack.c.l.b16 %v1728
    %v2377 = vunpack.c.l.b16 %v1729
    %v2378 = vunpack.c.l.b16 %v1730
    %v2379 = vunpack.c.l.b16 %v1731
    %v2380 = vunpack.c.l.b16 %v1732
    %v2381 = vunpack.c.l.b16 %v1733
    %v2382 = vunpack.c.l.b16 %v1734
    %v2383 = vunpack.c.l.b16 %v1735
    %v2384 = vunpack.c.l.b16 %v1736
    %v2385 = vunpack.c.l.b16 %v1737
    %v2386 = vunpack.c.l.b16 %v1738
    %v2387 = vunpack.c.l.b16 %v1739
    %v2388 = vunpack.c.l.b16 %v1740
    %v2389 = vunpack.c.l.b16 %v1741
    %v2390 = vunpack.c.l.b16 %v1742
    %v2391 = vunpack.c.l.b16 %v1743
    %v2392 = vunpack.c.l.b16 %v1744
    %v2393 = vunpack.c.l.b16 %v1745
    %v2394 = vunpack.c.l.b16 %v1746
    %v2395 = vunpack.c.l.b16 %v1747
    %v2396 = vunpack.c.l.b16 %v1748
    %v2397 = vunpack.c.l.b16 %v1749
    %v2398 = vpack.c.b16 %v2367, %v2366
    %v2399 = vpack.c.b16 %v2369, %v2368
    %v2400 = vpack.c.b16 %v2371, %v2370
    %v2401 = vpack.c.b16 %v2373, %v2372
    %v2402 = vpack.c.b16 %v2375, %v2374
    %v2403 = vpack.c.b16 %v2377, %v2376
    %v2404 = vpack.c.b16 %v2379, %v2378
    %v2405 = vpack.c.b16 %v2381, %v2380
    %v2406 = vpack.c.b16 %v2383, %v2382
    %v2407 = vpack.c.b16 %v2385, %v2384
    %v2408 = vpack.c.b16 %v2387, %v2386
    %v2409 = vpack.c.b16 %v2389, %v2388
    %v2410 = vpack.c.b16 %v2391, %v2390
    %v2411 = vpack.c.b16 %v2393, %v2392
    %v2412 = vpack.c.b16 %v2395, %v2394
    %v2413 = vpack.c.b16 %v2397, %v2396
    %2430 = vmatpush.bf16.msra.mxu0 %v2405
    %2431 = vmatpush.bf16.msra.mxu0 %v2404
    %2432 = vmatpush.bf16.msra.mxu0 %v2403
    %2433 = vmatpush.bf16.msra.mxu0 %v2402
    %2434 = vmatpush.bf16.msra.mxu0 %v2401
    %2435 = vmatpush.bf16.msra.mxu0 %v2400
    %2436 = vmatpush.bf16.msra.mxu0 %v2399
    %2437 = vmatpush.bf16.msra.mxu0 %v2398
    %2438 = vmatmul.bf16.gmra.mxu0 1065369472
    %v2439 = vpop.f32.mrf.mxu0
    %v2440 = vadd.f32 0.0, %v2439
    %v2441 = vpop.f32.mrf.mxu0
    %2442 = vdwg.mxu0
    %2443 = vmatpush.bf16.msra.mxu0 %v2413
    %2444 = vmatpush.bf16.msra.mxu0 %v2412
    %2445 = vmatpush.bf16.msra.mxu0 %v2411
    %2446 = vmatpush.bf16.msra.mxu0 %v2410
    %2447 = vmatpush.bf16.msra.mxu0 %v2409
    %2448 = vmatpush.bf16.msra.mxu0 %v2408
    %2449 = vmatpush.bf16.msra.mxu0 %v2407
    %2450 = vmatpush.bf16.msra.mxu0 %v2406
    %2451 = vmatmul.bf16.gmra.mxu0 1065369472
    %v2452 = vpop.f32.mrf.mxu0
    %v2453 = vadd.f32 %v2440, %v2452
    %v2454 = vpop.f32.mrf.mxu0
    %2455 = vdwg.mxu0
    %v2488 = vunpack.c.l.b16 %v1750
    %v2489 = vunpack.c.l.b16 %v1751
    %v2490 = vunpack.c.l.b16 %v1752
    %v2491 = vunpack.c.l.b16 %v1753
    %v2492 = vunpack.c.l.b16 %v1754
    %v2493 = vunpack.c.l.b16 %v1755
    %v2494 = vunpack.c.l.b16 %v1756
    %v2495 = vunpack.c.l.b16 %v1757
    %v2496 = vunpack.c.l.b16 %v1758
    %v2497 = vunpack.c.l.b16 %v1759
    %v2498 = vunpack.c.l.b16 %v1760
    %v2499 = vunpack.c.l.b16 %v1761
    %v2500 = vunpack.c.l.b16 %v1762
    %v2501 = vunpack.c.l.b16 %v1763
    %v2502 = vunpack.c.l.b16 %v1764
    %v2503 = vunpack.c.l.b16 %v1765
    %v2504 = vunpack.c.l.b16 %v1766
    %v2505 = vunpack.c.l.b16 %v1767
    %v2506 = vunpack.c.l.b16 %v1768
    %v2507 = vunpack.c.l.b16 %v1769
    %v2508 = vunpack.c.l.b16 %v1770
    %v2509 = vunpack.c.l.b16 %v1771
    %v2510 = vunpack.c.l.b16 %v1772
    %v2511 = vunpack.c.l.b16 %v1773
    %v2512 = vunpack.c.l.b16 %v1774
    %v2513 = vunpack.c.l.b16 %v1775
    %v2514 = vunpack.c.l.b16 %v1776
    %v2515 = vunpack.c.l.b16 %v1777
    %v2516 = vunpack.c.l.b16 %v1778
    %v2517 = vunpack.c.l.b16 %v1779
    %v2518 = vunpack.c.l.b16 %v1780
    %v2519 = vunpack.c.l.b16 %v1781
    %v2520 = vpack.c.b16 %v2489, %v2488
    %v2521 = vpack.c.b16 %v2491, %v2490
    %v2522 = vpack.c.b16 %v2493, %v2492
    %v2523 = vpack.c.b16 %v2495, %v2494
    %v2524 = vpack.c.b16 %v2497, %v2496
    %v2525 = vpack.c.b16 %v2499, %v2498
    %v2526 = vpack.c.b16 %v2501, %v2500
    %v2527 = vpack.c.b16 %v2503, %v2502
    %v2528 = vpack.c.b16 %v2505, %v2504
    %v2529 = vpack.c.b16 %v2507, %v2506
    %v2530 = vpack.c.b16 %v2509, %v2508
    %v2531 = vpack.c.b16 %v2511, %v2510
    %v2532 = vpack.c.b16 %v2513, %v2512
    %v2533 = vpack.c.b16 %v2515, %v2514
    %v2534 = vpack.c.b16 %v2517, %v2516
    %v2535 = vpack.c.b16 %v2519, %v2518
    %2552 = vmatpush.bf16.msra.mxu0 %v2527
    %2553 = vmatpush.bf16.msra.mxu0 %v2526
    %2554 = vmatpush.bf16.msra.mxu0 %v2525
    %2555 = vmatpush.bf16.msra.mxu0 %v2524
    %2556 = vmatpush.bf16.msra.mxu0 %v2523
    %2557 = vmatpush.bf16.msra.mxu0 %v2522
    %2558 = vmatpush.bf16.msra.mxu0 %v2521
    %2559 = vmatpush.bf16.msra.mxu0 %v2520
    %2560 = vmatmul.bf16.gmra.mxu0 1065369472
    %v2561 = vpop.f32.mrf.mxu0
    %v2562 = vadd.f32 0.0, %v2561
    %v2563 = vpop.f32.mrf.mxu0
    %2564 = vdwg.mxu0
    %2565 = vmatpush.bf16.msra.mxu0 %v2535
    %2566 = vmatpush.bf16.msra.mxu0 %v2534
    %2567 = vmatpush.bf16.msra.mxu0 %v2533
    %2568 = vmatpush.bf16.msra.mxu0 %v2532
    %2569 = vmatpush.bf16.msra.mxu0 %v2531
    %2570 = vmatpush.bf16.msra.mxu0 %v2530
    %2571 = vmatpush.bf16.msra.mxu0 %v2529
    %2572 = vmatpush.bf16.msra.mxu0 %v2528
    %2573 = vmatmul.bf16.gmra.mxu0 1065369472
    %v2574 = vpop.f32.mrf.mxu0
    %v2575 = vadd.f32 %v2562, %v2574
    %v2576 = vpop.f32.mrf.mxu0
    %2577 = vdwg.mxu0
    %v2610 = vunpack.c.l.b16 %v1782
    %v2611 = vunpack.c.l.b16 %v1783
    %v2612 = vunpack.c.l.b16 %v1784
    %v2613 = vunpack.c.l.b16 %v1785
    %v2614 = vunpack.c.l.b16 %v1786
    %v2615 = vunpack.c.l.b16 %v1787
    %v2616 = vunpack.c.l.b16 %v1788
    %v2617 = vunpack.c.l.b16 %v1789
    %v2618 = vunpack.c.l.b16 %v1790
    %v2619 = vunpack.c.l.b16 %v1791
    %v2620 = vunpack.c.l.b16 %v1792
    %v2621 = vunpack.c.l.b16 %v1793
    %v2622 = vunpack.c.l.b16 %v1794
    %v2623 = vunpack.c.l.b16 %v1795
    %v2624 = vunpack.c.l.b16 %v1796
    %v2625 = vunpack.c.l.b16 %v1797
    %v2626 = vunpack.c.l.b16 %v1798
    %v2627 = vunpack.c.l.b16 %v1799
    %v2628 = vunpack.c.l.b16 %v1800
    %v2629 = vunpack.c.l.b16 %v1801
    %v2630 = vunpack.c.l.b16 %v1802
    %v2631 = vunpack.c.l.b16 %v1803
    %v2632 = vunpack.c.l.b16 %v1804
    %v2633 = vunpack.c.l.b16 %v1805
    %v2634 = vunpack.c.l.b16 %v1806
    %v2635 = vunpack.c.l.b16 %v1807
    %v2636 = vunpack.c.l.b16 %v1808
    %v2637 = vunpack.c.l.b16 %v1809
    %v2638 = vunpack.c.l.b16 %v1810
    %v2639 = vunpack.c.l.b16 %v1811
    %v2640 = vunpack.c.l.b16 %v1812
    %v2641 = vunpack.c.l.b16 %v1813
    %v2642 = vpack.c.b16 %v2611, %v2610
    %v2643 = vpack.c.b16 %v2613, %v2612
    %v2644 = vpack.c.b16 %v2615, %v2614
    %v2645 = vpack.c.b16 %v2617, %v2616
    %v2646 = vpack.c.b16 %v2619, %v2618
    %v2647 = vpack.c.b16 %v2621, %v2620
    %v2648 = vpack.c.b16 %v2623, %v2622
    %v2649 = vpack.c.b16 %v2625, %v2624
    %v2650 = vpack.c.b16 %v2627, %v2626
    %v2651 = vpack.c.b16 %v2629, %v2628
    %v2652 = vpack.c.b16 %v2631, %v2630
    %v2653 = vpack.c.b16 %v2633, %v2632
    %v2654 = vpack.c.b16 %v2635, %v2634
    %v2655 = vpack.c.b16 %v2637, %v2636
    %v2656 = vpack.c.b16 %v2639, %v2638
    %v2657 = vpack.c.b16 %v2641, %v2640
    %2674 = vmatpush.bf16.msra.mxu0 %v2649
    %2675 = vmatpush.bf16.msra.mxu0 %v2648
    %2676 = vmatpush.bf16.msra.mxu0 %v2647
    %2677 = vmatpush.bf16.msra.mxu0 %v2646
    %2678 = vmatpush.bf16.msra.mxu0 %v2645
    %2679 = vmatpush.bf16.msra.mxu0 %v2644
    %2680 = vmatpush.bf16.msra.mxu0 %v2643
    %2681 = vmatpush.bf16.msra.mxu0 %v2642
    %2682 = vmatmul.bf16.gmra.mxu0 1065369472
    %v2683 = vpop.f32.mrf.mxu0
    %v2684 = vadd.f32 0.0, %v2683
    %v2685 = vpop.f32.mrf.mxu0
    %2686 = vdwg.mxu0
    %2687 = vmatpush.bf16.msra.mxu0 %v2657
    %2688 = vmatpush.bf16.msra.mxu0 %v2656
    %2689 = vmatpush.bf16.msra.mxu0 %v2655
    %2690 = vmatpush.bf16.msra.mxu0 %v2654
    %2691 = vmatpush.bf16.msra.mxu0 %v2653
    %2692 = vmatpush.bf16.msra.mxu0 %v2652
    %2693 = vmatpush.bf16.msra.mxu0 %v2651
    %2694 = vmatpush.bf16.msra.mxu0 %v2650
    %2695 = vmatmul.bf16.gmra.mxu0 1065369472
    %v2696 = vpop.f32.mrf.mxu0
    %v2697 = vadd.f32 %v2684, %v2696
    %v2698 = vpop.f32.mrf.mxu0
    %2699 = vdwg.mxu0
    %v2732 = vunpack.c.l.b16 %v1814
    %v2733 = vunpack.c.l.b16 %v1815
    %v2734 = vunpack.c.l.b16 %v1816
    %v2735 = vunpack.c.l.b16 %v1817
    %v2736 = vunpack.c.l.b16 %v1818
    %v2737 = vunpack.c.l.b16 %v1819
    %v2738 = vunpack.c.l.b16 %v1820
    %v2739 = vunpack.c.l.b16 %v1821
    %v2740 = vunpack.c.l.b16 %v1822
    %v2741 = vunpack.c.l.b16 %v1823
    %v2742 = vunpack.c.l.b16 %v1824
    %v2743 = vunpack.c.l.b16 %v1825
    %v2744 = vunpack.c.l.b16 %v1826
    %v2745 = vunpack.c.l.b16 %v1827
    %v2746 = vunpack.c.l.b16 %v1828
    %v2747 = vunpack.c.l.b16 %v1829
    %v2748 = vunpack.c.l.b16 %v1830
    %v2749 = vunpack.c.l.b16 %v1831
    %v2750 = vunpack.c.l.b16 %v1832
    %v2751 = vunpack.c.l.b16 %v1833
    %v2752 = vunpack.c.l.b16 %v1834
    %v2753 = vunpack.c.l.b16 %v1835
    %v2754 = vunpack.c.l.b16 %v1836
    %v2755 = vunpack.c.l.b16 %v1837
    %v2756 = vunpack.c.l.b16 %v1838
    %v2757 = vunpack.c.l.b16 %v1839
    %v2758 = vunpack.c.l.b16 %v1840
    %v2759 = vunpack.c.l.b16 %v1841
    %v2760 = vunpack.c.l.b16 %v1842
    %v2761 = vunpack.c.l.b16 %v1843
    %v2762 = vunpack.c.l.b16 %v1844
    %v2763 = vunpack.c.l.b16 %v1845
    %v2764 = vpack.c.b16 %v2733, %v2732
    %v2765 = vpack.c.b16 %v2735, %v2734
    %v2766 = vpack.c.b16 %v2737, %v2736
    %v2767 = vpack.c.b16 %v2739, %v2738
    %v2768 = vpack.c.b16 %v2741, %v2740
    %v2769 = vpack.c.b16 %v2743, %v2742
    %v2770 = vpack.c.b16 %v2745, %v2744
    %v2771 = vpack.c.b16 %v2747, %v2746
    %v2772 = vpack.c.b16 %v2749, %v2748
    %v2773 = vpack.c.b16 %v2751, %v2750
    %v2774 = vpack.c.b16 %v2753, %v2752
    %v2775 = vpack.c.b16 %v2755, %v2754
    %v2776 = vpack.c.b16 %v2757, %v2756
    %v2777 = vpack.c.b16 %v2759, %v2758
    %v2778 = vpack.c.b16 %v2761, %v2760
    %v2779 = vpack.c.b16 %v2763, %v2762
    %2796 = vmatpush.bf16.msra.mxu0 %v2771
    %2797 = vmatpush.bf16.msra.mxu0 %v2770
    %2798 = vmatpush.bf16.msra.mxu0 %v2769
    %2799 = vmatpush.bf16.msra.mxu0 %v2768
    %2800 = vmatpush.bf16.msra.mxu0 %v2767
    %2801 = vmatpush.bf16.msra.mxu0 %v2766
    %2802 = vmatpush.bf16.msra.mxu0 %v2765
    %2803 = vmatpush.bf16.msra.mxu0 %v2764
    %2804 = vmatmul.bf16.gmra.mxu0 1065369472
    %v2805 = vpop.f32.mrf.mxu0
    %v2806 = vadd.f32 0.0, %v2805
    %v2807 = vpop.f32.mrf.mxu0
    %2808 = vdwg.mxu0
    %2809 = vmatpush.bf16.msra.mxu0 %v2779
    %2810 = vmatpush.bf16.msra.mxu0 %v2778
    %2811 = vmatpush.bf16.msra.mxu0 %v2777
    %2812 = vmatpush.bf16.msra.mxu0 %v2776
    %2813 = vmatpush.bf16.msra.mxu0 %v2775
    %2814 = vmatpush.bf16.msra.mxu0 %v2774
    %2815 = vmatpush.bf16.msra.mxu0 %v2773
    %2816 = vmatpush.bf16.msra.mxu0 %v2772
    %2817 = vmatmul.bf16.gmra.mxu0 1065369472
    %v2818 = vpop.f32.mrf.mxu0
    %v2819 = vadd.f32 %v2806, %v2818
    %v2820 = vpop.f32.mrf.mxu0
    %2821 = vdwg.mxu0
    %v2822 = vld [vmem:[#allocation7] sm:$0xff]
    %v2831 = vrot.slane %v2087, 7
    %vm2832 = vcmask 1041409
    %v2833 = vsel %vm2832, %v2831, %v1965
    %v2834 = vrot.slane %v2209, 6
    %vm2835 = vcmask 1042434
    %v2836 = vsel %vm2835, %v2834, %v2833
    %v2837 = vrot.slane %v2331, 5
    %vm2838 = vcmask 1043459
    %v2839 = vsel %vm2838, %v2837, %v2836
    %v2840 = vrot.slane %v2453, 4
    %vm2841 = vcmask 1044484
    %v2842 = vsel %vm2841, %v2840, %v2839
    %v2843 = vrot.slane %v2575, 3
    %vm2844 = vcmask 1045509
    %v2845 = vsel %vm2844, %v2843, %v2842
    %v2846 = vrot.slane %v2697, 2
    %vm2847 = vcmask 1046534
    %v2848 = vsel %vm2847, %v2846, %v2845
    %v2849 = vrot.slane %v2819, 1
    %vm2850 = vcmask 1047559
    %v2851 = vsel %vm2850, %v2849, %v2848
    %v2853 = vadd.f32 %v2822, %v2851
    %2854 = vst [vmem:[#allocation7] sm:$0xff] %v2853
    // Predicated region
    $region22: #{tpu_custom_call.1} parent=1 // pred_check
      %p2855 = pneg %p43
    $region23: #{tpu_custom_call.1} parent=1 // pred_check_branch
      %2857 = sbr.rel (%p2855) target = $region25
    $region24: #{tpu_custom_call.1} parent=1 // pred_region
      %v2858 = vld [vmem:[#allocation7] sm:$0xff]
      %v2859 = vmul.f32 %v2858, 0.00390625
      %2860 = vst [vmem:[#allocation7] sm:$0xff] %v2859
    $region25: #{tpu_custom_call.1} parent=1 // pred_fallthru
      _
    // Predicated region
    $region26: #{tpu_custom_call.1} parent=1 // pred_check
      _
    $region27: #{tpu_custom_call.1} parent=1 // pred_check_branch
      %2862 = sbr.rel (0) target = $region29
    $region28: #{tpu_custom_call.1} parent=1 // pred_region
      %2864 = vsyncadd [#allocation4], 0
      %s2866 = sshll.u32 [#allocation7], 4
      %s2867 = int_to_ptr.vmem [resolvable:$true] %s2866
      %s2868 = sshll.u32 %s2, 4
      %s2869 = int_to_ptr.hbm [resolvable:$true] %s2868
      %2871 = dma.vmem_to_hbm [thread:$0]  %s2867, 128, %s2869, [#allocation4]
    $region29: #{tpu_custom_call.1} parent=1 // pred_fallthru
      _
    // Predicated region
    $region30: #{tpu_custom_call.1} parent=1 // pred_check
      _
    $region31: #{tpu_custom_call.1} parent=1 // pred_check_branch
      %2873 = sbr.rel (0) target = $region33
    $region32: #{tpu_custom_call.1} parent=1 // pred_region
      %2875 = dma.done [#allocation4], 128
    $region33: #{tpu_custom_call.1} parent=1 // pred_fallthru
      _
    %2876 = vsyncpa [#allocation3], 1
    %2877 = vsyncpa [#allocation6], 1
    %2878 = vsyncpa [#allocation4], 1

</llo_original>
